<compile_context>
chip_gen: v5e
topology: v5e:2x2
jax: 0.10.0
libtpu: 0.0.40
codegen_flags: <defaults>
</compile_context>

<pallas_src>
import functools

import jax
import jax.numpy as jnp
from jax import lax
from jax.experimental import pallas as pl
from jax.experimental.pallas import tpu as pltpu

SELU_ALPHA = 1.6732632423543772
SELU_SCALE = 1.0507009873554805


def _inconv3d_kernel(x_ref, w_ref, b_ref, o_ref, col_ref, acc_ref, *,
                     Cin_pad, Hp, Wp, vol0, pflat_pad):
    """One (batch, kd-group) step of Conv3d(k=3, pad=1) + SELU.

    Layout: channels on sublanes, flattened padded spatial on lanes.
      x_ref  : (1, Cin_pad, flat_total)   bf16, resident across the kd axis
      w_ref  : (1, Cout, 9*Cin_pad)       bf16 weights of this kd group
      b_ref  : (Cout, 1)                  f32
      o_ref  : (1, Cout, pflat_pad)       written on the last kd step only
      col_ref: (9*Cin_pad, pflat_pad)     bf16 kd-group im2col scratch
      acc_ref: (Cout, pflat_pad)          f32 accumulator across kd steps
    """
    kd_id = pl.program_id(1)

    @pl.when(kd_id == 0)
    def _init():
        acc_ref[...] = jnp.zeros_like(acc_ref)

    # Fill the 9-tap column block of this kd group. The 3-way pl.when keeps
    # every lane slice START a Python constant (no dynamic lane offsets).
    for kd in range(3):
        @pl.when(kd_id == kd)
        def _fill(kd=kd):
            for kh in range(3):
                for kw in range(3):
                    g = kh * 3 + kw
                    start = (vol0 + (kd - 1) * Hp * Wp
                             + (kh - 1) * Wp + (kw - 1))     # >= 0 by construction
                    col_ref[g * Cin_pad:(g + 1) * Cin_pad, :] = (
                        x_ref[0, :, start:start + pflat_pad])

    # One K = 9*Cin_pad bf16 MXU contraction per kd group, f32 accumulation.
    acc_ref[...] += jnp.dot(w_ref[0], col_ref[...],
                            preferred_element_type=jnp.float32)

    @pl.when(kd_id == pl.num_programs(1) - 1)
    def _finalize():
        y = acc_ref[...] + b_ref[...]            # (Cout, 1) broadcasts on lanes
        # SELU of the reference module: scale*relu(y) + scale*alpha*(-relu(1-exp(y)))
        neg = SELU_SCALE * SELU_ALPHA * (jnp.exp(jnp.minimum(y, 0.0)) - 1.0)
        o_ref[0] = jnp.where(y > 0.0, SELU_SCALE * y, neg).astype(o_ref.dtype)


def inconv3d(x_ncdhw, weight_oidhw, bias):
    """InConv3d forward.  x: (N, Cin, D, H, W), weight: (Cout, Cin, 3, 3, 3)."""
    N, Cin, D, H, W = x_ncdhw.shape
    Cout = weight_oidhw.shape[0]
    Dp, Hp, Wp = D + 2, H + 2, W + 2
    pflat = Dp * Hp * Wp
    pflat_pad = ((pflat + 127) // 128) * 128        # lane-dense output width
    Cin_pad = ((Cin + 7) // 8) * 8                  # sublane-aligned tap rows
    halo = Hp * Wp + Wp + 1                         # max |flat offset| of any tap

    # Single fused pad: channel pad + conv frame + flat halo, realised as extra
    # D planes (lo-1 extra planes >= halo always, since Hp*Wp >= Wp+1).
    lo = 3
    vol0 = (lo - 1) * Hp * Wp                       # flat start of conv-padded volume
    need = vol0 + pflat_pad + halo                  # max flat index read + 1
    hi = max(1, -(-(need - (D + lo) * Hp * Wp) // (Hp * Wp)))
    flat_total = (D + lo + hi) * Hp * Wp

    xb = jnp.pad(x_ncdhw.astype(jnp.bfloat16),
                 ((0, 0), (0, Cin_pad - Cin), (lo, hi), (1, 1), (1, 1)))
    x_flat = xb.reshape(N, Cin_pad, flat_total)

    # Weights: (3 kd groups, Cout, 9*Cin_pad) bf16, columns ordered (kh, kw, cin).
    w_pad = jnp.pad(weight_oidhw.astype(jnp.bfloat16),
                    ((0, 0), (0, Cin_pad - Cin), (0, 0), (0, 0), (0, 0)))
    w3 = jnp.transpose(w_pad, (2, 0, 3, 4, 1)).reshape(3, Cout, 9 * Cin_pad)
    b2 = bias.astype(jnp.float32).reshape(Cout, 1)

    kernel = functools.partial(_inconv3d_kernel, Cin_pad=Cin_pad, Hp=Hp, Wp=Wp,
                               vol0=vol0, pflat_pad=pflat_pad)

    out_flat = pl.pallas_call(
        kernel,
        out_shape=jax.ShapeDtypeStruct((N, Cout, pflat_pad), x_ncdhw.dtype),
        grid_spec=pltpu.PrefetchScalarGridSpec(
            num_scalar_prefetch=0,
            grid=(N, 3),                             # batch x kd-group (reduction)
            in_specs=[
                pl.BlockSpec((1, Cin_pad, flat_total), lambda n, kd: (n, 0, 0)),
                pl.BlockSpec((1, Cout, 9 * Cin_pad), lambda n, kd: (kd, 0, 0)),
                pl.BlockSpec((Cout, 1), lambda n, kd: (0, 0)),
            ],
            out_specs=pl.BlockSpec((1, Cout, pflat_pad), lambda n, kd: (n, 0, 0)),
            scratch_shapes=[
                pltpu.VMEM((9 * Cin_pad, pflat_pad), jnp.bfloat16),  # kd-group im2col
                pltpu.VMEM((Cout, pflat_pad), jnp.float32),          # f32 accumulator
            ],
        ),
        compiler_params=pltpu.CompilerParams(
            dimension_semantics=("parallel", "arbitrary")),
    )(x_flat, w3, b2)

    # Interior (valid) positions of the padded-flat output.
    out = out_flat[:, :, :pflat].reshape(N, Cout, Dp, Hp, Wp)
    return out[:, :, 1:1 + D, 1:1 + H, 1:1 + W]


def _selu_ref(x):
    return (SELU_SCALE * jnp.maximum(x, 0.0)
            + SELU_SCALE * SELU_ALPHA * (-jnp.maximum(1.0 - jnp.exp(x), 0.0)))


if __name__ == "__main__":
    key = jax.random.PRNGKey(0)
    k_x, k_w, k_b = jax.random.split(key, 3)

    N, Cin, Cout = 2, 4, 8
    D = H = W = 8

    x = jax.random.normal(k_x, (N, Cin, D, H, W), dtype=jnp.float32)

    # Deterministic "kaiming_normal_(nonlinearity='linear')" init:
    # gain=1, std = 1/sqrt(fan_in), fan_in = Cin * 3*3*3.
    fan_in = Cin * 27
    w_std = 1.0 / (fan_in ** 0.5)
    weight = w_std * jax.random.normal(k_w, (Cout, Cin, 3, 3, 3),
                                       dtype=jnp.float32)
    # PyTorch default conv bias init: U(-1/sqrt(fan_in), 1/sqrt(fan_in)).
    b_bound = 1.0 / (fan_in ** 0.5)
    bias = jax.random.uniform(k_b, (Cout,), dtype=jnp.float32,
                              minval=-b_bound, maxval=b_bound)

    out = jax.block_until_ready(inconv3d(x, weight, bias))

    # Pure-JAX reference: conv3d SAME + SELU on bf16-quantized operands (the
    # kernel deliberately runs the matmul in bf16 with f32 accumulation).
    xq = x.astype(jnp.bfloat16).astype(jnp.float32)
    wq = weight.astype(jnp.bfloat16).astype(jnp.float32)
    ref_conv = lax.conv_general_dilated(
        xq, wq, window_strides=(1, 1, 1), padding="SAME",
        dimension_numbers=("NCDHW", "OIDHW", "NCDHW"),
        precision=lax.Precision.HIGHEST)
    ref = _selu_ref(ref_conv + bias[None, :, None, None, None])

    assert out.shape == (N, Cout, D, H, W)
    max_err = float(jnp.max(jnp.abs(out - ref)))
    assert jnp.allclose(out, ref, atol=5e-3, rtol=5e-3), max_err

    print("KERNEL_OK")
</pallas_src>

<mosaic_0001>
module attributes {stable_mosaic.version = 11 : i64} {
  func.func @_inconv3d_kernel(%arg0: i32, %arg1: i32, %arg2: memref<1x8x1400xbf16, #tpu.memory_space<vmem>>, %arg3: memref<1x8x72xbf16, #tpu.memory_space<vmem>>, %arg4: memref<8x1xf32, #tpu.memory_space<vmem>>, %arg5: memref<1x8x1024xf32, #tpu.memory_space<vmem>>, %arg6: memref<72x1024xbf16, #tpu.memory_space<vmem>>, %arg7: memref<8x1024xf32, #tpu.memory_space<vmem>>) attributes {dimension_semantics = [#tpu.dimension_semantics<parallel>, #tpu.dimension_semantics<arbitrary>], iteration_bounds = array<i64: 2, 3>, scalar_prefetch = 0 : i64, scratch_operands = 2 : i64, tpu.core_type = #tpu.core_type<tc>, window_params = [{transform_indices = @transform_0, window_bounds = array<i64: 1, 8, 1400>}, {transform_indices = @transform_1, window_bounds = array<i64: 1, 8, 72>}, {pipeline_mode = #tpu.pipeline_mode<synchronous>, transform_indices = @transform_2, window_bounds = array<i64: 8, 1>}, {transform_indices = @transform_3, window_bounds = array<i64: 1, 8, 1024>}]} {
    %c0_i32 = arith.constant 0 : i32
    %0 = arith.cmpi eq, %arg1, %c0_i32 : i32
    %1 = arith.extui %0 : i1 to i32
    %c0_i32_0 = arith.constant 0 : i32
    %2 = arith.cmpi ne, %1, %c0_i32_0 : i32
    scf.if %2 {
      %cst_15 = arith.constant 0.000000e+00 : f32
      %22 = vector.broadcast %cst_15 : f32 to vector<8x1024xf32>
      %c0_16 = arith.constant 0 : index
      %c0_17 = arith.constant 0 : index
      %23 = vector.load %arg7[%c0_16, %c0_17] : memref<8x1024xf32, #tpu.memory_space<vmem>>, vector<8x1024xf32>
      tpu.vector_store %arg7[%c0_16, %c0_17], %22 {strides = array<i32>} : memref<8x1024xf32, #tpu.memory_space<vmem>>, vector<8x1024xf32>,
    } else {
    }
    %c0_i32_1 = arith.constant 0 : i32
    %3 = arith.cmpi eq, %arg1, %c0_i32_1 : i32
    %4 = arith.extui %3 : i1 to i32
    %c0_i32_2 = arith.constant 0 : i32
    %5 = arith.cmpi ne, %4, %c0_i32_2 : i32
    scf.if %5 {
      %c0_15 = arith.constant 0 : index
      %c0_16 = arith.constant 0 : index
      %c89 = arith.constant 89 : index
      %22 = vector.load %arg2[%c0_15, %c0_16, %c89] : memref<1x8x1400xbf16, #tpu.memory_space<vmem>>, vector<1x8x1024xbf16>
      %23 = vector.shape_cast %22 : vector<1x8x1024xbf16> to vector<8x1024xbf16>
      %c0_17 = arith.constant 0 : index
      %c0_18 = arith.constant 0 : index
      %24 = vector.load %arg6[%c0_17, %c0_18] : memref<72x1024xbf16, #tpu.memory_space<vmem>>, vector<8x1024xbf16>
      tpu.vector_store %arg6[%c0_17, %c0_18], %23 {strides = array<i32>} : memref<72x1024xbf16, #tpu.memory_space<vmem>>, vector<8x1024xbf16>,
      %c0_19 = arith.constant 0 : index
      %c0_20 = arith.constant 0 : index
      %c90 = arith.constant 90 : index
      %25 = vector.load %arg2[%c0_19, %c0_20, %c90] : memref<1x8x1400xbf16, #tpu.memory_space<vmem>>, vector<1x8x1024xbf16>
      %26 = vector.shape_cast %25 : vector<1x8x1024xbf16> to vector<8x1024xbf16>
      %c8 = arith.constant 8 : index
      %c0_21 = arith.constant 0 : index
      %27 = vector.load %arg6[%c8, %c0_21] : memref<72x1024xbf16, #tpu.memory_space<vmem>>, vector<8x1024xbf16>
      tpu.vector_store %arg6[%c8, %c0_21], %26 {strides = array<i32>} : memref<72x1024xbf16, #tpu.memory_space<vmem>>, vector<8x1024xbf16>,
      %c0_22 = arith.constant 0 : index
      %c0_23 = arith.constant 0 : index
      %c91 = arith.constant 91 : index
      %28 = vector.load %arg2[%c0_22, %c0_23, %c91] : memref<1x8x1400xbf16, #tpu.memory_space<vmem>>, vector<1x8x1024xbf16>
      %29 = vector.shape_cast %28 : vector<1x8x1024xbf16> to vector<8x1024xbf16>
      %c16 = arith.constant 16 : index
      %c0_24 = arith.constant 0 : index
      %30 = vector.load %arg6[%c16, %c0_24] : memref<72x1024xbf16, #tpu.memory_space<vmem>>, vector<8x1024xbf16>
      tpu.vector_store %arg6[%c16, %c0_24], %29 {strides = array<i32>} : memref<72x1024xbf16, #tpu.memory_space<vmem>>, vector<8x1024xbf16>,
      %c0_25 = arith.constant 0 : index
      %c0_26 = arith.constant 0 : index
      %c99 = arith.constant 99 : index
      %31 = vector.load %arg2[%c0_25, %c0_26, %c99] : memref<1x8x1400xbf16, #tpu.memory_space<vmem>>, vector<1x8x1024xbf16>
      %32 = vector.shape_cast %31 : vector<1x8x1024xbf16> to vector<8x1024xbf16>
      %c24 = arith.constant 24 : index
      %c0_27 = arith.constant 0 : index
      %33 = vector.load %arg6[%c24, %c0_27] : memref<72x1024xbf16, #tpu.memory_space<vmem>>, vector<8x1024xbf16>
      tpu.vector_store %arg6[%c24, %c0_27], %32 {strides = array<i32>} : memref<72x1024xbf16, #tpu.memory_space<vmem>>, vector<8x1024xbf16>,
      %c0_28 = arith.constant 0 : index
      %c0_29 = arith.constant 0 : index
      %c100 = arith.constant 100 : index
      %34 = vector.load %arg2[%c0_28, %c0_29, %c100] : memref<1x8x1400xbf16, #tpu.memory_space<vmem>>, vector<1x8x1024xbf16>
      %35 = vector.shape_cast %34 : vector<1x8x1024xbf16> to vector<8x1024xbf16>
      %c32 = arith.constant 32 : index
      %c0_30 = arith.constant 0 : index
      %36 = vector.load %arg6[%c32, %c0_30] : memref<72x1024xbf16, #tpu.memory_space<vmem>>, vector<8x1024xbf16>
      tpu.vector_store %arg6[%c32, %c0_30], %35 {strides = array<i32>} : memref<72x1024xbf16, #tpu.memory_space<vmem>>, vector<8x1024xbf16>,
      %c0_31 = arith.constant 0 : index
      %c0_32 = arith.constant 0 : index
      %c101 = arith.constant 101 : index
      %37 = vector.load %arg2[%c0_31, %c0_32, %c101] : memref<1x8x1400xbf16, #tpu.memory_space<vmem>>, vector<1x8x1024xbf16>
      %38 = vector.shape_cast %37 : vector<1x8x1024xbf16> to vector<8x1024xbf16>
      %c40 = arith.constant 40 : index
      %c0_33 = arith.constant 0 : index
      %39 = vector.load %arg6[%c40, %c0_33] : memref<72x1024xbf16, #tpu.memory_space<vmem>>, vector<8x1024xbf16>
      tpu.vector_store %arg6[%c40, %c0_33], %38 {strides = array<i32>} : memref<72x1024xbf16, #tpu.memory_space<vmem>>, vector<8x1024xbf16>,
      %c0_34 = arith.constant 0 : index
      %c0_35 = arith.constant 0 : index
      %c109 = arith.constant 109 : index
      %40 = vector.load %arg2[%c0_34, %c0_35, %c109] : memref<1x8x1400xbf16, #tpu.memory_space<vmem>>, vector<1x8x1024xbf16>
      %41 = vector.shape_cast %40 : vector<1x8x1024xbf16> to vector<8x1024xbf16>
      %c48 = arith.constant 48 : index
      %c0_36 = arith.constant 0 : index
      %42 = vector.load %arg6[%c48, %c0_36] : memref<72x1024xbf16, #tpu.memory_space<vmem>>, vector<8x1024xbf16>
      tpu.vector_store %arg6[%c48, %c0_36], %41 {strides = array<i32>} : memref<72x1024xbf16, #tpu.memory_space<vmem>>, vector<8x1024xbf16>,
      %c0_37 = arith.constant 0 : index
      %c0_38 = arith.constant 0 : index
      %c110 = arith.constant 110 : index
      %43 = vector.load %arg2[%c0_37, %c0_38, %c110] : memref<1x8x1400xbf16, #tpu.memory_space<vmem>>, vector<1x8x1024xbf16>
      %44 = vector.shape_cast %43 : vector<1x8x1024xbf16> to vector<8x1024xbf16>
      %c56 = arith.constant 56 : index
      %c0_39 = arith.constant 0 : index
      %45 = vector.load %arg6[%c56, %c0_39] : memref<72x1024xbf16, #tpu.memory_space<vmem>>, vector<8x1024xbf16>
      tpu.vector_store %arg6[%c56, %c0_39], %44 {strides = array<i32>} : memref<72x1024xbf16, #tpu.memory_space<vmem>>, vector<8x1024xbf16>,
      %c0_40 = arith.constant 0 : index
      %c0_41 = arith.constant 0 : index
      %c111 = arith.constant 111 : index
      %46 = vector.load %arg2[%c0_40, %c0_41, %c111] : memref<1x8x1400xbf16, #tpu.memory_space<vmem>>, vector<1x8x1024xbf16>
      %47 = vector.shape_cast %46 : vector<1x8x1024xbf16> to vector<8x1024xbf16>
      %c64 = arith.constant 64 : index
      %c0_42 = arith.constant 0 : index
      %48 = vector.load %arg6[%c64, %c0_42] : memref<72x1024xbf16, #tpu.memory_space<vmem>>, vector<8x1024xbf16>
      tpu.vector_store %arg6[%c64, %c0_42], %47 {strides = array<i32>} : memref<72x1024xbf16, #tpu.memory_space<vmem>>, vector<8x1024xbf16>,
    } else {
    }
    %c1_i32 = arith.constant 1 : i32
    %6 = arith.cmpi eq, %arg1, %c1_i32 : i32
    %7 = arith.extui %6 : i1 to i32
    %c0_i32_3 = arith.constant 0 : i32
    %8 = arith.cmpi ne, %7, %c0_i32_3 : i32
    scf.if %8 {
      %c0_15 = arith.constant 0 : index
      %c0_16 = arith.constant 0 : index
      %c189 = arith.constant 189 : index
      %22 = vector.load %arg2[%c0_15, %c0_16, %c189] : memref<1x8x1400xbf16, #tpu.memory_space<vmem>>, vector<1x8x1024xbf16>
      %23 = vector.shape_cast %22 : vector<1x8x1024xbf16> to vector<8x1024xbf16>
      %c0_17 = arith.constant 0 : index
      %c0_18 = arith.constant 0 : index
      %24 = vector.load %arg6[%c0_17, %c0_18] : memref<72x1024xbf16, #tpu.memory_space<vmem>>, vector<8x1024xbf16>
      tpu.vector_store %arg6[%c0_17, %c0_18], %23 {strides = array<i32>} : memref<72x1024xbf16, #tpu.memory_space<vmem>>, vector<8x1024xbf16>,
      %c0_19 = arith.constant 0 : index
      %c0_20 = arith.constant 0 : index
      %c190 = arith.constant 190 : index
      %25 = vector.load %arg2[%c0_19, %c0_20, %c190] : memref<1x8x1400xbf16, #tpu.memory_space<vmem>>, vector<1x8x1024xbf16>
      %26 = vector.shape_cast %25 : vector<1x8x1024xbf16> to vector<8x1024xbf16>
      %c8 = arith.constant 8 : index
      %c0_21 = arith.constant 0 : index
      %27 = vector.load %arg6[%c8, %c0_21] : memref<72x1024xbf16, #tpu.memory_space<vmem>>, vector<8x1024xbf16>
      tpu.vector_store %arg6[%c8, %c0_21], %26 {strides = array<i32>} : memref<72x1024xbf16, #tpu.memory_space<vmem>>, vector<8x1024xbf16>,
      %c0_22 = arith.constant 0 : index
      %c0_23 = arith.constant 0 : index
      %c191 = arith.constant 191 : index
      %28 = vector.load %arg2[%c0_22, %c0_23, %c191] : memref<1x8x1400xbf16, #tpu.memory_space<vmem>>, vector<1x8x1024xbf16>
      %29 = vector.shape_cast %28 : vector<1x8x1024xbf16> to vector<8x1024xbf16>
      %c16 = arith.constant 16 : index
      %c0_24 = arith.constant 0 : index
      %30 = vector.load %arg6[%c16, %c0_24] : memref<72x1024xbf16, #tpu.memory_space<vmem>>, vector<8x1024xbf16>
      tpu.vector_store %arg6[%c16, %c0_24], %29 {strides = array<i32>} : memref<72x1024xbf16, #tpu.memory_space<vmem>>, vector<8x1024xbf16>,
      %c0_25 = arith.constant 0 : index
      %c0_26 = arith.constant 0 : index
      %c199 = arith.constant 199 : index
      %31 = vector.load %arg2[%c0_25, %c0_26, %c199] : memref<1x8x1400xbf16, #tpu.memory_space<vmem>>, vector<1x8x1024xbf16>
      %32 = vector.shape_cast %31 : vector<1x8x1024xbf16> to vector<8x1024xbf16>
      %c24 = arith.constant 24 : index
      %c0_27 = arith.constant 0 : index
      %33 = vector.load %arg6[%c24, %c0_27] : memref<72x1024xbf16, #tpu.memory_space<vmem>>, vector<8x1024xbf16>
      tpu.vector_store %arg6[%c24, %c0_27], %32 {strides = array<i32>} : memref<72x1024xbf16, #tpu.memory_space<vmem>>, vector<8x1024xbf16>,
      %c0_28 = arith.constant 0 : index
      %c0_29 = arith.constant 0 : index
      %c200 = arith.constant 200 : index
      %34 = vector.load %arg2[%c0_28, %c0_29, %c200] : memref<1x8x1400xbf16, #tpu.memory_space<vmem>>, vector<1x8x1024xbf16>
      %35 = vector.shape_cast %34 : vector<1x8x1024xbf16> to vector<8x1024xbf16>
      %c32 = arith.constant 32 : index
      %c0_30 = arith.constant 0 : index
      %36 = vector.load %arg6[%c32, %c0_30] : memref<72x1024xbf16, #tpu.memory_space<vmem>>, vector<8x1024xbf16>
      tpu.vector_store %arg6[%c32, %c0_30], %35 {strides = array<i32>} : memref<72x1024xbf16, #tpu.memory_space<vmem>>, vector<8x1024xbf16>,
      %c0_31 = arith.constant 0 : index
      %c0_32 = arith.constant 0 : index
      %c201 = arith.constant 201 : index
      %37 = vector.load %arg2[%c0_31, %c0_32, %c201] : memref<1x8x1400xbf16, #tpu.memory_space<vmem>>, vector<1x8x1024xbf16>
      %38 = vector.shape_cast %37 : vector<1x8x1024xbf16> to vector<8x1024xbf16>
      %c40 = arith.constant 40 : index
      %c0_33 = arith.constant 0 : index
      %39 = vector.load %arg6[%c40, %c0_33] : memref<72x1024xbf16, #tpu.memory_space<vmem>>, vector<8x1024xbf16>
      tpu.vector_store %arg6[%c40, %c0_33], %38 {strides = array<i32>} : memref<72x1024xbf16, #tpu.memory_space<vmem>>, vector<8x1024xbf16>,
      %c0_34 = arith.constant 0 : index
      %c0_35 = arith.constant 0 : index
      %c209 = arith.constant 209 : index
      %40 = vector.load %arg2[%c0_34, %c0_35, %c209] : memref<1x8x1400xbf16, #tpu.memory_space<vmem>>, vector<1x8x1024xbf16>
      %41 = vector.shape_cast %40 : vector<1x8x1024xbf16> to vector<8x1024xbf16>
      %c48 = arith.constant 48 : index
      %c0_36 = arith.constant 0 : index
      %42 = vector.load %arg6[%c48, %c0_36] : memref<72x1024xbf16, #tpu.memory_space<vmem>>, vector<8x1024xbf16>
      tpu.vector_store %arg6[%c48, %c0_36], %41 {strides = array<i32>} : memref<72x1024xbf16, #tpu.memory_space<vmem>>, vector<8x1024xbf16>,
      %c0_37 = arith.constant 0 : index
      %c0_38 = arith.constant 0 : index
      %c210 = arith.constant 210 : index
      %43 = vector.load %arg2[%c0_37, %c0_38, %c210] : memref<1x8x1400xbf16, #tpu.memory_space<vmem>>, vector<1x8x1024xbf16>
      %44 = vector.shape_cast %43 : vector<1x8x1024xbf16> to vector<8x1024xbf16>
      %c56 = arith.constant 56 : index
      %c0_39 = arith.constant 0 : index
      %45 = vector.load %arg6[%c56, %c0_39] : memref<72x1024xbf16, #tpu.memory_space<vmem>>, vector<8x1024xbf16>
      tpu.vector_store %arg6[%c56, %c0_39], %44 {strides = array<i32>} : memref<72x1024xbf16, #tpu.memory_space<vmem>>, vector<8x1024xbf16>,
      %c0_40 = arith.constant 0 : index
      %c0_41 = arith.constant 0 : index
      %c211 = arith.constant 211 : index
      %46 = vector.load %arg2[%c0_40, %c0_41, %c211] : memref<1x8x1400xbf16, #tpu.memory_space<vmem>>, vector<1x8x1024xbf16>
      %47 = vector.shape_cast %46 : vector<1x8x1024xbf16> to vector<8x1024xbf16>
      %c64 = arith.constant 64 : index
      %c0_42 = arith.constant 0 : index
      %48 = vector.load %arg6[%c64, %c0_42] : memref<72x1024xbf16, #tpu.memory_space<vmem>>, vector<8x1024xbf16>
      tpu.vector_store %arg6[%c64, %c0_42], %47 {strides = array<i32>} : memref<72x1024xbf16, #tpu.memory_space<vmem>>, vector<8x1024xbf16>,
    } else {
    }
    %c2_i32 = arith.constant 2 : i32
    %9 = arith.cmpi eq, %arg1, %c2_i32 : i32
    %10 = arith.extui %9 : i1 to i32
    %c0_i32_4 = arith.constant 0 : i32
    %11 = arith.cmpi ne, %10, %c0_i32_4 : i32
    scf.if %11 {
      %c0_15 = arith.constant 0 : index
      %c0_16 = arith.constant 0 : index
      %c289 = arith.constant 289 : index
      %22 = vector.load %arg2[%c0_15, %c0_16, %c289] : memref<1x8x1400xbf16, #tpu.memory_space<vmem>>, vector<1x8x1024xbf16>
      %23 = vector.shape_cast %22 : vector<1x8x1024xbf16> to vector<8x1024xbf16>
      %c0_17 = arith.constant 0 : index
      %c0_18 = arith.constant 0 : index
      %24 = vector.load %arg6[%c0_17, %c0_18] : memref<72x1024xbf16, #tpu.memory_space<vmem>>, vector<8x1024xbf16>
      tpu.vector_store %arg6[%c0_17, %c0_18], %23 {strides = array<i32>} : memref<72x1024xbf16, #tpu.memory_space<vmem>>, vector<8x1024xbf16>,
      %c0_19 = arith.constant 0 : index
      %c0_20 = arith.constant 0 : index
      %c290 = arith.constant 290 : index
      %25 = vector.load %arg2[%c0_19, %c0_20, %c290] : memref<1x8x1400xbf16, #tpu.memory_space<vmem>>, vector<1x8x1024xbf16>
      %26 = vector.shape_cast %25 : vector<1x8x1024xbf16> to vector<8x1024xbf16>
      %c8 = arith.constant 8 : index
      %c0_21 = arith.constant 0 : index
      %27 = vector.load %arg6[%c8, %c0_21] : memref<72x1024xbf16, #tpu.memory_space<vmem>>, vector<8x1024xbf16>
      tpu.vector_store %arg6[%c8, %c0_21], %26 {strides = array<i32>} : memref<72x1024xbf16, #tpu.memory_space<vmem>>, vector<8x1024xbf16>,
      %c0_22 = arith.constant 0 : index
      %c0_23 = arith.constant 0 : index
      %c291 = arith.constant 291 : index
      %28 = vector.load %arg2[%c0_22, %c0_23, %c291] : memref<1x8x1400xbf16, #tpu.memory_space<vmem>>, vector<1x8x1024xbf16>
      %29 = vector.shape_cast %28 : vector<1x8x1024xbf16> to vector<8x1024xbf16>
      %c16 = arith.constant 16 : index
      %c0_24 = arith.constant 0 : index
      %30 = vector.load %arg6[%c16, %c0_24] : memref<72x1024xbf16, #tpu.memory_space<vmem>>, vector<8x1024xbf16>
      tpu.vector_store %arg6[%c16, %c0_24], %29 {strides = array<i32>} : memref<72x1024xbf16, #tpu.memory_space<vmem>>, vector<8x1024xbf16>,
      %c0_25 = arith.constant 0 : index
      %c0_26 = arith.constant 0 : index
      %c299 = arith.constant 299 : index
      %31 = vector.load %arg2[%c0_25, %c0_26, %c299] : memref<1x8x1400xbf16, #tpu.memory_space<vmem>>, vector<1x8x1024xbf16>
      %32 = vector.shape_cast %31 : vector<1x8x1024xbf16> to vector<8x1024xbf16>
      %c24 = arith.constant 24 : index
      %c0_27 = arith.constant 0 : index
      %33 = vector.load %arg6[%c24, %c0_27] : memref<72x1024xbf16, #tpu.memory_space<vmem>>, vector<8x1024xbf16>
      tpu.vector_store %arg6[%c24, %c0_27], %32 {strides = array<i32>} : memref<72x1024xbf16, #tpu.memory_space<vmem>>, vector<8x1024xbf16>,
      %c0_28 = arith.constant 0 : index
      %c0_29 = arith.constant 0 : index
      %c300 = arith.constant 300 : index
      %34 = vector.load %arg2[%c0_28, %c0_29, %c300] : memref<1x8x1400xbf16, #tpu.memory_space<vmem>>, vector<1x8x1024xbf16>
      %35 = vector.shape_cast %34 : vector<1x8x1024xbf16> to vector<8x1024xbf16>
      %c32 = arith.constant 32 : index
      %c0_30 = arith.constant 0 : index
      %36 = vector.load %arg6[%c32, %c0_30] : memref<72x1024xbf16, #tpu.memory_space<vmem>>, vector<8x1024xbf16>
      tpu.vector_store %arg6[%c32, %c0_30], %35 {strides = array<i32>} : memref<72x1024xbf16, #tpu.memory_space<vmem>>, vector<8x1024xbf16>,
      %c0_31 = arith.constant 0 : index
      %c0_32 = arith.constant 0 : index
      %c301 = arith.constant 301 : index
      %37 = vector.load %arg2[%c0_31, %c0_32, %c301] : memref<1x8x1400xbf16, #tpu.memory_space<vmem>>, vector<1x8x1024xbf16>
      %38 = vector.shape_cast %37 : vector<1x8x1024xbf16> to vector<8x1024xbf16>
      %c40 = arith.constant 40 : index
      %c0_33 = arith.constant 0 : index
      %39 = vector.load %arg6[%c40, %c0_33] : memref<72x1024xbf16, #tpu.memory_space<vmem>>, vector<8x1024xbf16>
      tpu.vector_store %arg6[%c40, %c0_33], %38 {strides = array<i32>} : memref<72x1024xbf16, #tpu.memory_space<vmem>>, vector<8x1024xbf16>,
      %c0_34 = arith.constant 0 : index
      %c0_35 = arith.constant 0 : index
      %c309 = arith.constant 309 : index
      %40 = vector.load %arg2[%c0_34, %c0_35, %c309] : memref<1x8x1400xbf16, #tpu.memory_space<vmem>>, vector<1x8x1024xbf16>
      %41 = vector.shape_cast %40 : vector<1x8x1024xbf16> to vector<8x1024xbf16>
      %c48 = arith.constant 48 : index
      %c0_36 = arith.constant 0 : index
      %42 = vector.load %arg6[%c48, %c0_36] : memref<72x1024xbf16, #tpu.memory_space<vmem>>, vector<8x1024xbf16>
      tpu.vector_store %arg6[%c48, %c0_36], %41 {strides = array<i32>} : memref<72x1024xbf16, #tpu.memory_space<vmem>>, vector<8x1024xbf16>,
      %c0_37 = arith.constant 0 : index
      %c0_38 = arith.constant 0 : index
      %c310 = arith.constant 310 : index
      %43 = vector.load %arg2[%c0_37, %c0_38, %c310] : memref<1x8x1400xbf16, #tpu.memory_space<vmem>>, vector<1x8x1024xbf16>
      %44 = vector.shape_cast %43 : vector<1x8x1024xbf16> to vector<8x1024xbf16>
      %c56 = arith.constant 56 : index
      %c0_39 = arith.constant 0 : index
      %45 = vector.load %arg6[%c56, %c0_39] : memref<72x1024xbf16, #tpu.memory_space<vmem>>, vector<8x1024xbf16>
      tpu.vector_store %arg6[%c56, %c0_39], %44 {strides = array<i32>} : memref<72x1024xbf16, #tpu.memory_space<vmem>>, vector<8x1024xbf16>,
      %c0_40 = arith.constant 0 : index
      %c0_41 = arith.constant 0 : index
      %c311 = arith.constant 311 : index
      %46 = vector.load %arg2[%c0_40, %c0_41, %c311] : memref<1x8x1400xbf16, #tpu.memory_space<vmem>>, vector<1x8x1024xbf16>
      %47 = vector.shape_cast %46 : vector<1x8x1024xbf16> to vector<8x1024xbf16>
      %c64 = arith.constant 64 : index
      %c0_42 = arith.constant 0 : index
      %48 = vector.load %arg6[%c64, %c0_42] : memref<72x1024xbf16, #tpu.memory_space<vmem>>, vector<8x1024xbf16>
      tpu.vector_store %arg6[%c64, %c0_42], %47 {strides = array<i32>} : memref<72x1024xbf16, #tpu.memory_space<vmem>>, vector<8x1024xbf16>,
    } else {
    }
    %c0 = arith.constant 0 : index
    %c0_5 = arith.constant 0 : index
    %12 = vector.load %arg7[%c0, %c0_5] : memref<8x1024xf32, #tpu.memory_space<vmem>>, vector<8x1024xf32>
    %c0_6 = arith.constant 0 : index
    %c0_7 = arith.constant 0 : index
    %c0_8 = arith.constant 0 : index
    %13 = vector.load %arg3[%c0_6, %c0_7, %c0_8] : memref<1x8x72xbf16, #tpu.memory_space<vmem>>, vector<1x8x72xbf16>
    %14 = vector.shape_cast %13 : vector<1x8x72xbf16> to vector<8x72xbf16>
    %c0_9 = arith.constant 0 : index
    %c0_10 = arith.constant 0 : index
    %15 = vector.load %arg6[%c0_9, %c0_10] : memref<72x1024xbf16, #tpu.memory_space<vmem>>, vector<72x1024xbf16>
    %cst = arith.constant dense<0.000000e+00> : vector<8x1024xf32>
    %16 = tpu.matmul %14, %15, %cst {dimension_numbers = #tpu.dot_dimension_numbers<[1], [0], [0], [1], [0, 0, 1, 1], [], []>} : vector<8x72xbf16>, vector<72x1024xbf16>, vector<8x1024xf32> -> vector<8x1024xf32>
    %17 = arith.addf %12, %16 : vector<8x1024xf32>
    %c0_11 = arith.constant 0 : index
    %c0_12 = arith.constant 0 : index
    %18 = vector.load %arg7[%c0_11, %c0_12] : memref<8x1024xf32, #tpu.memory_space<vmem>>, vector<8x1024xf32>
    tpu.vector_store %arg7[%c0_11, %c0_12], %17 {strides = array<i32>} : memref<8x1024xf32, #tpu.memory_space<vmem>>, vector<8x1024xf32>,
    %c2_i32_13 = arith.constant 2 : i32
    %19 = arith.cmpi eq, %arg1, %c2_i32_13 : i32
    %20 = arith.extui %19 : i1 to i32
    %c0_i32_14 = arith.constant 0 : i32
    %21 = arith.cmpi ne, %20, %c0_i32_14 : i32
    scf.if %21 {
      %c0_15 = arith.constant 0 : index
      %c0_16 = arith.constant 0 : index
      %22 = vector.load %arg7[%c0_15, %c0_16] : memref<8x1024xf32, #tpu.memory_space<vmem>>, vector<8x1024xf32>
      %c0_17 = arith.constant 0 : index
      %c0_18 = arith.constant 0 : index
      %23 = vector.load %arg4[%c0_17, %c0_18] : memref<8x1xf32, #tpu.memory_space<vmem>>, vector<8x1xf32>
      %24 = vector.broadcast %23 : vector<8x1xf32> to vector<8x1024xf32>
      %25 = arith.addf %22, %24 : vector<8x1024xf32>
      %cst_19 = arith.constant 0.000000e+00 : f32
      %26 = vector.broadcast %cst_19 : f32 to vector<8x1024xf32>
      %27 = arith.minimumf %25, %26 : vector<8x1024xf32>
      %28 = math.exp %27 : vector<8x1024xf32>
      %cst_20 = arith.constant 1.000000e+00 : f32
      %29 = vector.broadcast %cst_20 : f32 to vector<8x1024xf32>
      %30 = arith.subf %28, %29 : vector<8x1024xf32>
      %cst_21 = arith.constant 1.75809932 : f32
      %31 = vector.broadcast %cst_21 : f32 to vector<8x1024xf32>
      %32 = arith.mulf %31, %30 : vector<8x1024xf32>
      %cst_22 = arith.constant 0.000000e+00 : f32
      %33 = vector.broadcast %cst_22 : f32 to vector<8x1024xf32>
      %34 = arith.cmpf ogt, %25, %33 : vector<8x1024xf32>
      %cst_23 = arith.constant 1.05070102 : f32
      %35 = vector.broadcast %cst_23 : f32 to vector<8x1024xf32>
      %36 = arith.mulf %35, %25 : vector<8x1024xf32>
      %37 = arith.select %34, %36, %32 : vector<8x1024xi1>, vector<8x1024xf32>
      %c0_24 = arith.constant 0 : index
      %c0_25 = arith.constant 0 : index
      %c0_26 = arith.constant 0 : index
      %38 = vector.load %arg5[%c0_24, %c0_25, %c0_26] : memref<1x8x1024xf32, #tpu.memory_space<vmem>>, vector<1x8x1024xf32>
      %39 = vector.shape_cast %38 : vector<1x8x1024xf32> to vector<8x1024xf32>
      %40 = vector.shape_cast %37 : vector<8x1024xf32> to vector<1x8x1024xf32>
      tpu.vector_store %arg5[%c0_24, %c0_25, %c0_26], %40 {strides = array<i32>} : memref<1x8x1024xf32, #tpu.memory_space<vmem>>, vector<1x8x1024xf32>,
    } else {
    }
    return
  }
  func.func @transform_0(%arg0: i32, %arg1: i32) -> (i32, i32, i32) {
    %c0_i32 = arith.constant 0 : i32
    %c0_i32_0 = arith.constant 0 : i32
    %c0_i32_1 = arith.constant 0 : i32
    return %arg0, %c0_i32, %c0_i32_0 : i32, i32, i32
  }
  func.func @transform_1(%arg0: i32, %arg1: i32) -> (i32, i32, i32) {
    %c0_i32 = arith.constant 0 : i32
    %c0_i32_0 = arith.constant 0 : i32
    %c0_i32_1 = arith.constant 0 : i32
    return %arg1, %c0_i32, %c0_i32_0 : i32, i32, i32
  }
  func.func @transform_2(%arg0: i32, %arg1: i32) -> (i32, i32) {
    %c0_i32 = arith.constant 0 : i32
    %c0_i32_0 = arith.constant 0 : i32
    %c0_i32_1 = arith.constant 0 : i32
    return %c0_i32, %c0_i32_0 : i32, i32
  }
  func.func @transform_3(%arg0: i32, %arg1: i32) -> (i32, i32, i32) {
    %c0_i32 = arith.constant 0 : i32
    %c0_i32_0 = arith.constant 0 : i32
    %c0_i32_1 = arith.constant 0 : i32
    return %arg0, %c0_i32, %c0_i32_0 : i32, i32, i32
  }
}

</mosaic_0001>

<llo_original>
// kernel: tpu_custom_call.1
$region0: #{tpu_custom_call.1}
  #allocation0 [shape = 'u32[]', space=smem, size = 0x4, offset = 0x4, fixed_abs, tag = 'smem constant byte address 0x4 - core index']
  #allocation1 [shape = 'u32[72,128]{1,0:T(1,128)}', space=vmem, size = 0x9000, scoped, tag = 'internal scratch']
  #allocation2 [shape = 'bf16[72,1024]{1,0:T(8,128)(2,1)}', space=vmem, size = 0x24000, scoped, tag = 'scratch operand']
  #allocation3 [shape = 'f32[8,1024]{1,0:T(8,128)}', space=vmem, size = 0x8000, scoped, tag = 'scratch operand']
  %s0 = inlined_call_operand.hbm [shape: bf16[2,8,1400], index: 0, kind: input, shape index: {}]
  %s1 = inlined_call_operand.hbm [shape: bf16[3,8,72], index: 1, kind: input, shape index: {}]
  %s2 = inlined_call_operand.vmem [shape: f32[8,1], index: 2, kind: input, shape index: {}]
  %s3 = inlined_call_operand.hbm [shape: f32[2,8,1024], index: 3, kind: output, shape index: {}]
  %s4 = sld [smem:[#allocation0]]
  $region69: #{tpu_custom_call.1} parent=0
    _
  %s6 = ssub.s32 1, %s4
  %s7 = scalar_select 0, %s6, %s4
  $region1: #{tpu_custom_call.1} parent=0
    #allocation4 [shape = 'u8[45056]{0}', space=vmem, size = 0xb000, scoped, tag = 'input window, operand 0']
    #allocation5 [shape = 's32[2]{0}', space=sflag, size = 0x8, scoped, tag = 'scoped memory for tpu_custom_call.1']
    #allocation6 [shape = 's32[2]{0}', space=sflag, size = 0x8, scoped, tag = 'scoped memory for tpu_custom_call.1']
    #allocation7 [shape = 'u8[4096]{0}', space=vmem, size = 0x1000, scoped, tag = 'input window, operand 1']
    #allocation8 [shape = 's32[2]{0}', space=sflag, size = 0x8, scoped, tag = 'scoped memory for tpu_custom_call.1']
    #allocation9 [shape = 'u8[65536]{0}', space=vmem, size = 0x10000, scoped, tag = 'output window, operand 0']
    %8 = vsyncpa [#allocation5], 0
    %s9 = scalar_lea.sflag [#allocation5], 1
    %10 = vsyncpa %s9, 0
    %11 = vsyncpa [#allocation8], 0
    %s12 = scalar_lea.sflag [#allocation8], 1
    %13 = vsyncpa %s12, 0
    %14 = vsyncpa [#allocation6], 0
    %s15 = scalar_lea.sflag [#allocation6], 1
    %16 = vsyncpa %s15, 0
    loop: start=0, step=1, limit=8
    $region2: #{tpu_custom_call.1} parent=1 // loop_pre_header
      _
    $region3: #{tpu_custom_call.1} parent=1 // loop_header
      %s18 = sphi 0, %s22
      %p19 = scmp.ge.s32.totalorder %s18, 8
      %s25 = sphi 0, %s37
      %s26 = sphi 0, %s33
      %s27 = sphi 0, %s25
      %s28 = sphi 0, %s26
      %s29 = sphi 0, %s27
      %s30 = sphi 0, %s28
      %s40 = sphi 0, %s42
      %s43 = sphi 0, %s40
      %s44 = sphi 0, %s43
      %s60 = sphi 0, %s44
      %s66 = sphi 0, %s68
      %s69 = sphi 0, %s66
      %s70 = sphi 0, %s69
      %s86 = sphi 0, %s70
      %s90 = sphi 0, %s90
      %s92 = sphi 0, %s90
      %s93 = sphi 0, %s92
      %s107 = sphi 0, %s93
      %s113 = sphi 0, %s115
      %s116 = sphi 0, %s113
      %s117 = sphi 0, %s116
      %s133 = sphi 0, %s117
    $region4: #{tpu_custom_call.1} parent=1 // loop_header_branch
      %21 = sbr.rel (%p19) target = $region8
    $region5: #{tpu_custom_call.1} parent=1 // loop_body
      %s23 = ssub.s32 %s18, 1
      %s24 = ssub.s32 %s18, 2
      %s31 = sadd.s32 1, %s26
      %p32 = scmp.ge.s32.totalorder %s31, 3
      %s33 = scalar_select %p32, 0, %s31
      %s34 = sadd.s32 1, %s25
      %s35 = scalar_select %p32, %s34, %s25
      %p36 = scmp.ge.s32.totalorder %s35, 2
      %s37 = scalar_select %p36, 0, %s35
      %s38 = ssub.s32 %s25, %s37
      %p39 = scmp.eq.s32.totalorder %s38, 0
      %s41 = sadd.s32 %s40, 1
      %s42 = scalar_select %p39, %s40, %s41
      %p45 = pneg %p39
      %p46 = scmp.eq.s32.totalorder %s18, 5
      %p47 = por %p45, %p46
      %p48 = scmp.ne.s32.totalorder %s40, %s43
      %p49 = scmp.eq.s32.totalorder %s18, 0
      %p50 = por %p48, %p49
      %p51 = scmp.ne.s32.totalorder %s40, %s43
      %p52 = scmp.eq.s32.totalorder %s23, 5
      %p53 = por %p51, %p52
      %p54 = scmp.ne.s32.totalorder %s43, %s44
      %p55 = scmp.eq.s32.totalorder %s23, 0
      %p56 = por %p54, %p55
      %p57 = scmp.ne.s32.totalorder %s43, %s44
      %p58 = scmp.eq.s32.totalorder %s24, 5
      %p59 = por %p57, %p58
      %p61 = scmp.ne.s32.totalorder %s44, %s60
      %p62 = scmp.eq.s32.totalorder %s24, 0
      %p63 = por %p61, %p62
      %s64 = ssub.s32 %s26, %s33
      %p65 = scmp.eq.s32.totalorder %s64, 0
      %s67 = sadd.s32 %s66, 1
      %s68 = scalar_select %p65, %s66, %s67
      %p71 = pneg %p65
      %p72 = scmp.eq.s32.totalorder %s18, 5
      %p73 = por %p71, %p72
      %p74 = scmp.ne.s32.totalorder %s66, %s69
      %p75 = scmp.eq.s32.totalorder %s18, 0
      %p76 = por %p74, %p75
      %p77 = scmp.ne.s32.totalorder %s66, %s69
      %p78 = scmp.eq.s32.totalorder %s23, 5
      %p79 = por %p77, %p78
      %p80 = scmp.ne.s32.totalorder %s69, %s70
      %p81 = scmp.eq.s32.totalorder %s23, 0
      %p82 = por %p80, %p81
      %p83 = scmp.ne.s32.totalorder %s69, %s70
      %p84 = scmp.eq.s32.totalorder %s24, 5
      %p85 = por %p83, %p84
      %p87 = scmp.ne.s32.totalorder %s70, %s86
      %p88 = scmp.eq.s32.totalorder %s24, 0
      %p89 = por %p87, %p88
      %s91 = sadd.s32 %s90, 1
      %p94 = scmp.eq.s32.totalorder %s18, 5
      %p95 = scmp.ne.s32.totalorder %s90, %s92
      %p96 = scmp.eq.s32.totalorder %s18, 0
      %p97 = por %p95, %p96
      %p98 = scmp.ne.s32.totalorder %s90, %s92
      %p99 = scmp.eq.s32.totalorder %s23, 5
      %p100 = por %p98, %p99
      %p101 = scmp.ne.s32.totalorder %s92, %s93
      %p102 = scmp.eq.s32.totalorder %s23, 0
      %p103 = por %p101, %p102
      %p104 = scmp.ne.s32.totalorder %s92, %s93
      %p105 = scmp.eq.s32.totalorder %s24, 5
      %p106 = por %p104, %p105
      %p108 = scmp.ne.s32.totalorder %s93, %s107
      %p109 = scmp.eq.s32.totalorder %s24, 0
      %p110 = por %p108, %p109
      %s111 = ssub.s32 %s25, %s37
      %p112 = scmp.eq.s32.totalorder %s111, 0
      %s114 = sadd.s32 %s113, 1
      %s115 = scalar_select %p112, %s113, %s114
      %p118 = pneg %p112
      %p119 = scmp.eq.s32.totalorder %s18, 5
      %p120 = por %p118, %p119
      %p121 = scmp.ne.s32.totalorder %s113, %s116
      %p122 = scmp.eq.s32.totalorder %s18, 0
      %p123 = por %p121, %p122
      %p124 = scmp.ne.s32.totalorder %s113, %s116
      %p125 = scmp.eq.s32.totalorder %s23, 5
      %p126 = por %p124, %p125
      %p127 = scmp.ne.s32.totalorder %s116, %s117
      %p128 = scmp.eq.s32.totalorder %s23, 0
      %p129 = por %p127, %p128
      %p130 = scmp.ne.s32.totalorder %s116, %s117
      %p131 = scmp.eq.s32.totalorder %s24, 5
      %p132 = por %p130, %p131
      %p134 = scmp.ne.s32.totalorder %s117, %s133
      %p135 = scmp.eq.s32.totalorder %s24, 0
      %p136 = por %p134, %p135
      %p137 = scmp.le.s32.totalorder 1, %s18
      %p138 = scmp.lt.s32.totalorder %s18, 7
      %p139 = pnand %p137, %p138
      %p140 = pneg %p139
      // Predicated region
      $region9: #{tpu_custom_call.1} parent=5 // pred_check
        _
      $region10: #{tpu_custom_call.1} parent=5 // pred_check_branch
        %142 = sbr.rel (%p139) target = $region12
      $region11: #{tpu_custom_call.1} parent=5 // pred_region
        %s143 = ssub.s32 %s18, 1
        // Predicated region
        $region13: #{tpu_custom_call.1} parent=11 // pred_check
          %p144 = pneg %p103
        $region14: #{tpu_custom_call.1} parent=11 // pred_check_branch
          %146 = sbr.rel (%p144) target = $region16
        $region15: #{tpu_custom_call.1} parent=11 // pred_region
          _
        $region16: #{tpu_custom_call.1} parent=11 // pred_fallthru
          _
      $region12: #{tpu_custom_call.1} parent=5 // pred_fallthru
        _
      %p147 = scmp.lt.s32.totalorder %s18, 6
      // Predicated region
      $region17: #{tpu_custom_call.1} parent=5 // pred_check
        %p148 = pneg %p147
      $region18: #{tpu_custom_call.1} parent=5 // pred_check_branch
        %150 = sbr.rel (%p148) target = $region20
      $region19: #{tpu_custom_call.1} parent=5 // pred_region
        // Predicated region
        $region21: #{tpu_custom_call.1} parent=19 // pred_check
          %p151 = pneg %p50
        $region22: #{tpu_custom_call.1} parent=19 // pred_check_branch
          %153 = sbr.rel (%p151) target = $region24
        $region23: #{tpu_custom_call.1} parent=19 // pred_region
          %s154 = sand.u32 %s40, 1
          %s155 = scalar_lea.sflag [#allocation5], %s154
          %s156 = sand.u32 %s40, 1
          %s157 = smul.addr %s156, 44
          %s158 = scalar_lea.vmem [#allocation4], %s157
          %160 = vsyncadd %s155, 0
          %s161 = smul.addr %s25, 11
          %s162 = smul.addr %s161, 4
          %s163 = scalar_lea.hbm %s0, %s162
          %s165 = sshll.u32 %s163, 4
          %s166 = int_to_ptr.hbm [resolvable:$true] %s165
          %s167 = sshll.u32 %s158, 4
          %s168 = int_to_ptr.vmem [resolvable:$true] %s167
          %170 = dma.hbm_to_vmem [thread:$0]  %s166, 704, %s168, %s155
        $region24: #{tpu_custom_call.1} parent=19 // pred_fallthru
          _
        // Predicated region
        $region25: #{tpu_custom_call.1} parent=19 // pred_check
          %p171 = pneg %p76
        $region26: #{tpu_custom_call.1} parent=19 // pred_check_branch
          %173 = sbr.rel (%p171) target = $region28
        $region27: #{tpu_custom_call.1} parent=19 // pred_region
          %s174 = sand.u32 %s66, 1
          %s175 = scalar_lea.sflag [#allocation8], %s174
          %s176 = sand.u32 %s66, 1
          %s177 = smul.addr %s176, 4
          %s178 = scalar_lea.vmem [#allocation7], %s177
          %180 = vsyncadd %s175, 0
          %s181 = smul.addr %s26, 4
          %s182 = scalar_lea.hbm %s1, %s181
          %s184 = sshll.u32 %s182, 4
          %s185 = int_to_ptr.hbm [resolvable:$true] %s184
          %s186 = sshll.u32 %s178, 4
          %s187 = int_to_ptr.vmem [resolvable:$true] %s186
          %189 = dma.hbm_to_vmem [thread:$0]  %s185, 64, %s187, %s175
        $region28: #{tpu_custom_call.1} parent=19 // pred_fallthru
          _
      $region20: #{tpu_custom_call.1} parent=5 // pred_fallthru
        _
      %p190 = scmp.le.s32.totalorder 1, %s18
      %p191 = scmp.lt.s32.totalorder %s18, 7
      %p192 = pnand %p190, %p191
      %p193 = pneg %p192
      // Predicated region
      $region29: #{tpu_custom_call.1} parent=5 // pred_check
        _
      $region30: #{tpu_custom_call.1} parent=5 // pred_check_branch
        %195 = sbr.rel (%p192) target = $region32
      $region31: #{tpu_custom_call.1} parent=5 // pred_region
        %s196 = ssub.s32 %s18, 1
        %s197 = sand.u32 %s43, 1
        %s198 = scalar_lea.sflag [#allocation5], %s197
        %s199 = sand.u32 %s43, 1
        %s200 = smul.addr %s199, 44
        %s201 = scalar_lea.vmem [#allocation4], %s200
        // Predicated region
        $region33: #{tpu_custom_call.1} parent=31 // pred_check
          %p202 = pneg %p56
        $region34: #{tpu_custom_call.1} parent=31 // pred_check_branch
          %204 = sbr.rel (%p202) target = $region36
        $region35: #{tpu_custom_call.1} parent=31 // pred_region
          %206 = dma.done %s198, 704
        $region36: #{tpu_custom_call.1} parent=31 // pred_fallthru
          _
        %s207 = sand.u32 %s69, 1
        %s208 = scalar_lea.sflag [#allocation8], %s207
        %s209 = sand.u32 %s69, 1
        %s210 = smul.addr %s209, 4
        %s211 = scalar_lea.vmem [#allocation7], %s210
        // Predicated region
        $region37: #{tpu_custom_call.1} parent=31 // pred_check
          %p212 = pneg %p82
        $region38: #{tpu_custom_call.1} parent=31 // pred_check_branch
          %214 = sbr.rel (%p212) target = $region40
        $region39: #{tpu_custom_call.1} parent=31 // pred_region
          %216 = dma.done %s208, 64
        $region40: #{tpu_custom_call.1} parent=31 // pred_fallthru
          _
        %s217 = sand.u32 %s43, 1
        %s218 = scalar_lea.sflag [#allocation5], %s217
        %s219 = sand.u32 %s43, 1
        %s220 = smul.addr %s219, 44
        %s221 = scalar_lea.vmem [#allocation4], %s220
        %p222 = pneg %p56
        %p223 = pneg %p53
        %s224 = sand.u32 %s69, 1
        %s225 = scalar_lea.sflag [#allocation8], %s224
        %s226 = sand.u32 %s69, 1
        %s227 = smul.addr %s226, 4
        %s228 = scalar_lea.vmem [#allocation7], %s227
        %p229 = pneg %p82
        %p230 = pneg %p79
        %p231 = pneg %p103
        %p232 = pneg %p100
        %p233 = pneg %p129
        %p234 = pneg %p126
        %s235 = sand.u32 %s116, 1
        %s236 = scalar_lea.sflag [#allocation6], %s235
        %s237 = sand.u32 %s116, 1
        %s238 = smul.addr %s237, 64
        %s239 = scalar_lea.vmem [#allocation9], %s238
        %p241 = scmp.eq.s32.totalorder %s28, 0
        // Predicated region
        $region41: #{tpu_custom_call.1} parent=31 // pred_check
          %p242 = pneg %p241
        $region42: #{tpu_custom_call.1} parent=31 // pred_check_branch
          %244 = sbr.rel (%p242) target = $region44
        $region43: #{tpu_custom_call.1} parent=31 // pred_region
          %245 = vst [vmem:[#allocation3] sm:$0xff] 0.0
          %246 = vst [vmem:[#allocation3 + $0x8] sm:$0xff] 0.0
          %247 = vst [vmem:[#allocation3 + $0x10] sm:$0xff] 0.0
          %248 = vst [vmem:[#allocation3 + $0x18] sm:$0xff] 0.0
          %249 = vst [vmem:[#allocation3 + $0x20] sm:$0xff] 0.0
          %250 = vst [vmem:[#allocation3 + $0x28] sm:$0xff] 0.0
          %251 = vst [vmem:[#allocation3 + $0x30] sm:$0xff] 0.0
          %252 = vst [vmem:[#allocation3 + $0x38] sm:$0xff] 0.0
          %v253 = vld [vmem:[%s201] sm:$0xff]
          %v254 = vld [vmem:[%s201 + $0x8] sm:$0xff]
          %v255 = vld [vmem:[%s201 + $0x10] sm:$0xff]
          %v256 = vld [vmem:[%s201 + $0x18] sm:$0xff]
          %v257 = vld [vmem:[%s201 + $0x20] sm:$0xf]
          %263 = vrot.lane.b32.xlu0 %v253, 39
          %v264 = vpop.permute.xlu0 %263
          %265 = vrot.lane.b32.xlu0 %v254, 39
          %v266 = vpop.permute.xlu0 %265
          %267 = vrot.lane.b32.xlu0 %v255, 39
          %v268 = vpop.permute.xlu0 %267
          %269 = vrot.lane.b32.xlu0 %v256, 39
          %v270 = vpop.permute.xlu0 %269
          %271 = vrot.lane.b32.xlu0 %v257, 39
          %v272 = vpop.permute.xlu0 %271
          %v273 = vrot.slane %v264, 4
          %v274 = vrot.slane %v266, 4
          %v275 = vrot.slane %v268, 4
          %v276 = vrot.slane %v270, 4
          %v277 = vrot.slane %v272, 4
          %vm278 = vcmask 1043456
          %v279 = vsel %vm278, %v273, %v274
          %vm280 = vcmask 318464
          %v281 = vsel %vm280, %v264, %v279
          %v282 = vsel %vm278, %v274, %v275
          %v283 = vsel %vm280, %v266, %v282
          %v284 = vsel %vm278, %v275, %v276
          %v285 = vsel %vm280, %v268, %v284
          %v286 = vsel %vm278, %v276, %v277
          %v287 = vsel %vm280, %v270, %v286
          %292 = vst [vmem:[#allocation2] sm:$0xff] %v281
          %293 = vst [vmem:[#allocation2 + $0x8] sm:$0xff] %v283
          %294 = vst [vmem:[#allocation2 + $0x10] sm:$0xff] %v285
          %295 = vst [vmem:[#allocation2 + $0x18] sm:$0xff] %v287
          %v296 = vld [vmem:[%s201] sm:$0xff]
          %v297 = vld [vmem:[%s201 + $0x8] sm:$0xff]
          %v298 = vld [vmem:[%s201 + $0x10] sm:$0xff]
          %v299 = vld [vmem:[%s201 + $0x18] sm:$0xff]
          %v300 = vld [vmem:[%s201 + $0x20] sm:$0xf]
          %306 = vrot.lane.b32.xlu0 %v296, 38
          %v307 = vpop.permute.xlu0 %306
          %308 = vrot.lane.b32.xlu0 %v297, 38
          %v309 = vpop.permute.xlu0 %308
          %310 = vrot.lane.b32.xlu0 %v298, 38
          %v311 = vpop.permute.xlu0 %310
          %312 = vrot.lane.b32.xlu0 %v299, 38
          %v313 = vpop.permute.xlu0 %312
          %314 = vrot.lane.b32.xlu0 %v300, 38
          %v315 = vpop.permute.xlu0 %314
          %v316 = vrot.slane %v307, 4
          %v317 = vrot.slane %v309, 4
          %v318 = vrot.slane %v311, 4
          %v319 = vrot.slane %v313, 4
          %v320 = vrot.slane %v315, 4
          %v321 = vsel %vm278, %v316, %v317
          %vm322 = vcmask 310272
          %v323 = vsel %vm322, %v307, %v321
          %v324 = vsel %vm278, %v317, %v318
          %v325 = vsel %vm322, %v309, %v324
          %v326 = vsel %vm278, %v318, %v319
          %v327 = vsel %vm322, %v311, %v326
          %v328 = vsel %vm278, %v319, %v320
          %v329 = vsel %vm322, %v313, %v328
          %334 = vst [vmem:[#allocation2 + $0x20] sm:$0xff] %v323
          %335 = vst [vmem:[#allocation2 + $0x28] sm:$0xff] %v325
          %336 = vst [vmem:[#allocation2 + $0x30] sm:$0xff] %v327
          %337 = vst [vmem:[#allocation2 + $0x38] sm:$0xff] %v329
          %v338 = vld [vmem:[%s201] sm:$0xff]
          %v339 = vld [vmem:[%s201 + $0x8] sm:$0xff]
          %v340 = vld [vmem:[%s201 + $0x10] sm:$0xff]
          %v341 = vld [vmem:[%s201 + $0x18] sm:$0xff]
          %v342 = vld [vmem:[%s201 + $0x20] sm:$0xf]
          %348 = vrot.lane.b32.xlu0 %v338, 37
          %v349 = vpop.permute.xlu0 %348
          %350 = vrot.lane.b32.xlu0 %v339, 37
          %v351 = vpop.permute.xlu0 %350
          %352 = vrot.lane.b32.xlu0 %v340, 37
          %v353 = vpop.permute.xlu0 %352
          %354 = vrot.lane.b32.xlu0 %v341, 37
          %v355 = vpop.permute.xlu0 %354
          %356 = vrot.lane.b32.xlu0 %v342, 37
          %v357 = vpop.permute.xlu0 %356
          %v358 = vrot.slane %v349, 4
          %v359 = vrot.slane %v351, 4
          %v360 = vrot.slane %v353, 4
          %v361 = vrot.slane %v355, 4
          %v362 = vrot.slane %v357, 4
          %v363 = vsel %vm278, %v358, %v359
          %vm364 = vcmask 302080
          %v365 = vsel %vm364, %v349, %v363
          %v366 = vsel %vm278, %v359, %v360
          %v367 = vsel %vm364, %v351, %v366
          %v368 = vsel %vm278, %v360, %v361
          %v369 = vsel %vm364, %v353, %v368
          %v370 = vsel %vm278, %v361, %v362
          %v371 = vsel %vm364, %v355, %v370
          %376 = vst [vmem:[#allocation2 + $0x40] sm:$0xff] %v365
          %377 = vst [vmem:[#allocation2 + $0x48] sm:$0xff] %v367
          %378 = vst [vmem:[#allocation2 + $0x50] sm:$0xff] %v369
          %379 = vst [vmem:[#allocation2 + $0x58] sm:$0xff] %v371
          %v380 = vld [vmem:[%s201] sm:$0xff]
          %v381 = vld [vmem:[%s201 + $0x8] sm:$0xff]
          %v382 = vld [vmem:[%s201 + $0x10] sm:$0xff]
          %v383 = vld [vmem:[%s201 + $0x18] sm:$0xff]
          %v384 = vld [vmem:[%s201 + $0x20] sm:$0xf]
          %390 = vrot.lane.b32.xlu0 %v380, 29
          %v391 = vpop.permute.xlu0 %390
          %392 = vrot.lane.b32.xlu0 %v381, 29
          %v393 = vpop.permute.xlu0 %392
          %394 = vrot.lane.b32.xlu0 %v382, 29
          %v395 = vpop.permute.xlu0 %394
          %396 = vrot.lane.b32.xlu0 %v383, 29
          %v397 = vpop.permute.xlu0 %396
          %398 = vrot.lane.b32.xlu0 %v384, 29
          %v399 = vpop.permute.xlu0 %398
          %v400 = vrot.slane %v391, 4
          %v401 = vrot.slane %v393, 4
          %v402 = vrot.slane %v395, 4
          %v403 = vrot.slane %v397, 4
          %v404 = vrot.slane %v399, 4
          %v405 = vsel %vm278, %v400, %v401
          %vm406 = vcmask 236544
          %v407 = vsel %vm406, %v391, %v405
          %v408 = vsel %vm278, %v401, %v402
          %v409 = vsel %vm406, %v393, %v408
          %v410 = vsel %vm278, %v402, %v403
          %v411 = vsel %vm406, %v395, %v410
          %v412 = vsel %vm278, %v403, %v404
          %v413 = vsel %vm406, %v397, %v412
          %418 = vst [vmem:[#allocation2 + $0x60] sm:$0xff] %v407
          %419 = vst [vmem:[#allocation2 + $0x68] sm:$0xff] %v409
          %420 = vst [vmem:[#allocation2 + $0x70] sm:$0xff] %v411
          %421 = vst [vmem:[#allocation2 + $0x78] sm:$0xff] %v413
          %v422 = vld [vmem:[%s201] sm:$0xff]
          %v423 = vld [vmem:[%s201 + $0x8] sm:$0xff]
          %v424 = vld [vmem:[%s201 + $0x10] sm:$0xff]
          %v425 = vld [vmem:[%s201 + $0x18] sm:$0xff]
          %v426 = vld [vmem:[%s201 + $0x20] sm:$0xf]
          %432 = vrot.lane.b32.xlu0 %v422, 28
          %v433 = vpop.permute.xlu0 %432
          %434 = vrot.lane.b32.xlu0 %v423, 28
          %v435 = vpop.permute.xlu0 %434
          %436 = vrot.lane.b32.xlu0 %v424, 28
          %v437 = vpop.permute.xlu0 %436
          %438 = vrot.lane.b32.xlu0 %v425, 28
          %v439 = vpop.permute.xlu0 %438
          %440 = vrot.lane.b32.xlu0 %v426, 28
          %v441 = vpop.permute.xlu0 %440
          %v442 = vrot.slane %v433, 4
          %v443 = vrot.slane %v435, 4
          %v444 = vrot.slane %v437, 4
          %v445 = vrot.slane %v439, 4
          %v446 = vrot.slane %v441, 4
          %v447 = vsel %vm278, %v442, %v443
          %vm448 = vcmask 228352
          %v449 = vsel %vm448, %v433, %v447
          %v450 = vsel %vm278, %v443, %v444
          %v451 = vsel %vm448, %v435, %v450
          %v452 = vsel %vm278, %v444, %v445
          %v453 = vsel %vm448, %v437, %v452
          %v454 = vsel %vm278, %v445, %v446
          %v455 = vsel %vm448, %v439, %v454
          %460 = vst [vmem:[#allocation2 + $0x80] sm:$0xff] %v449
          %461 = vst [vmem:[#allocation2 + $0x88] sm:$0xff] %v451
          %462 = vst [vmem:[#allocation2 + $0x90] sm:$0xff] %v453
          %463 = vst [vmem:[#allocation2 + $0x98] sm:$0xff] %v455
          %v464 = vld [vmem:[%s201] sm:$0xff]
          %v465 = vld [vmem:[%s201 + $0x8] sm:$0xff]
          %v466 = vld [vmem:[%s201 + $0x10] sm:$0xff]
          %v467 = vld [vmem:[%s201 + $0x18] sm:$0xff]
          %v468 = vld [vmem:[%s201 + $0x20] sm:$0xf]
          %474 = vrot.lane.b32.xlu0 %v464, 27
          %v475 = vpop.permute.xlu0 %474
          %476 = vrot.lane.b32.xlu0 %v465, 27
          %v477 = vpop.permute.xlu0 %476
          %478 = vrot.lane.b32.xlu0 %v466, 27
          %v479 = vpop.permute.xlu0 %478
          %480 = vrot.lane.b32.xlu0 %v467, 27
          %v481 = vpop.permute.xlu0 %480
          %482 = vrot.lane.b32.xlu0 %v468, 27
          %v483 = vpop.permute.xlu0 %482
          %v484 = vrot.slane %v475, 4
          %v485 = vrot.slane %v477, 4
          %v486 = vrot.slane %v479, 4
          %v487 = vrot.slane %v481, 4
          %v488 = vrot.slane %v483, 4
          %v489 = vsel %vm278, %v484, %v485
          %vm490 = vcmask 220160
          %v491 = vsel %vm490, %v475, %v489
          %v492 = vsel %vm278, %v485, %v486
          %v493 = vsel %vm490, %v477, %v492
          %v494 = vsel %vm278, %v486, %v487
          %v495 = vsel %vm490, %v479, %v494
          %v496 = vsel %vm278, %v487, %v488
          %v497 = vsel %vm490, %v481, %v496
          %502 = vst [vmem:[#allocation2 + $0xa0] sm:$0xff] %v491
          %503 = vst [vmem:[#allocation2 + $0xa8] sm:$0xff] %v493
          %504 = vst [vmem:[#allocation2 + $0xb0] sm:$0xff] %v495
          %505 = vst [vmem:[#allocation2 + $0xb8] sm:$0xff] %v497
          %v506 = vld [vmem:[%s201] sm:$0xff]
          %v507 = vld [vmem:[%s201 + $0x8] sm:$0xff]
          %v508 = vld [vmem:[%s201 + $0x10] sm:$0xff]
          %v509 = vld [vmem:[%s201 + $0x18] sm:$0xff]
          %v510 = vld [vmem:[%s201 + $0x20] sm:$0xf]
          %516 = vrot.lane.b32.xlu0 %v506, 19
          %v517 = vpop.permute.xlu0 %516
          %518 = vrot.lane.b32.xlu0 %v507, 19
          %v519 = vpop.permute.xlu0 %518
          %520 = vrot.lane.b32.xlu0 %v508, 19
          %v521 = vpop.permute.xlu0 %520
          %522 = vrot.lane.b32.xlu0 %v509, 19
          %v523 = vpop.permute.xlu0 %522
          %524 = vrot.lane.b32.xlu0 %v510, 19
          %v525 = vpop.permute.xlu0 %524
          %v526 = vrot.slane %v517, 4
          %v527 = vrot.slane %v519, 4
          %v528 = vrot.slane %v521, 4
          %v529 = vrot.slane %v523, 4
          %v530 = vrot.slane %v525, 4
          %v531 = vsel %vm278, %v526, %v527
          %vm532 = vcmask 154624
          %v533 = vsel %vm532, %v517, %v531
          %v534 = vsel %vm278, %v527, %v528
          %v535 = vsel %vm532, %v519, %v534
          %v536 = vsel %vm278, %v528, %v529
          %v537 = vsel %vm532, %v521, %v536
          %v538 = vsel %vm278, %v529, %v530
          %v539 = vsel %vm532, %v523, %v538
          %544 = vst [vmem:[#allocation2 + $0xc0] sm:$0xff] %v533
          %545 = vst [vmem:[#allocation2 + $0xc8] sm:$0xff] %v535
          %546 = vst [vmem:[#allocation2 + $0xd0] sm:$0xff] %v537
          %547 = vst [vmem:[#allocation2 + $0xd8] sm:$0xff] %v539
          %v548 = vld [vmem:[%s201] sm:$0xff]
          %v549 = vld [vmem:[%s201 + $0x8] sm:$0xff]
          %v550 = vld [vmem:[%s201 + $0x10] sm:$0xff]
          %v551 = vld [vmem:[%s201 + $0x18] sm:$0xff]
          %v552 = vld [vmem:[%s201 + $0x20] sm:$0xf]
          %558 = vrot.lane.b32.xlu0 %v548, 18
          %v559 = vpop.permute.xlu0 %558
          %560 = vrot.lane.b32.xlu0 %v549, 18
          %v561 = vpop.permute.xlu0 %560
          %562 = vrot.lane.b32.xlu0 %v550, 18
          %v563 = vpop.permute.xlu0 %562
          %564 = vrot.lane.b32.xlu0 %v551, 18
          %v565 = vpop.permute.xlu0 %564
          %566 = vrot.lane.b32.xlu0 %v552, 18
          %v567 = vpop.permute.xlu0 %566
          %v568 = vrot.slane %v559, 4
          %v569 = vrot.slane %v561, 4
          %v570 = vrot.slane %v563, 4
          %v571 = vrot.slane %v565, 4
          %v572 = vrot.slane %v567, 4
          %v573 = vsel %vm278, %v568, %v569
          %vm574 = vcmask 146432
          %v575 = vsel %vm574, %v559, %v573
          %v576 = vsel %vm278, %v569, %v570
          %v577 = vsel %vm574, %v561, %v576
          %v578 = vsel %vm278, %v570, %v571
          %v579 = vsel %vm574, %v563, %v578
          %v580 = vsel %vm278, %v571, %v572
          %v581 = vsel %vm574, %v565, %v580
          %586 = vst [vmem:[#allocation2 + $0xe0] sm:$0xff] %v575
          %587 = vst [vmem:[#allocation2 + $0xe8] sm:$0xff] %v577
          %588 = vst [vmem:[#allocation2 + $0xf0] sm:$0xff] %v579
          %589 = vst [vmem:[#allocation2 + $0xf8] sm:$0xff] %v581
          %v590 = vld [vmem:[%s201] sm:$0xff]
          %v591 = vld [vmem:[%s201 + $0x8] sm:$0xff]
          %v592 = vld [vmem:[%s201 + $0x10] sm:$0xff]
          %v593 = vld [vmem:[%s201 + $0x18] sm:$0xff]
          %v594 = vld [vmem:[%s201 + $0x20] sm:$0xf]
          %600 = vrot.lane.b32.xlu0 %v590, 17
          %v601 = vpop.permute.xlu0 %600
          %602 = vrot.lane.b32.xlu0 %v591, 17
          %v603 = vpop.permute.xlu0 %602
          %604 = vrot.lane.b32.xlu0 %v592, 17
          %v605 = vpop.permute.xlu0 %604
          %606 = vrot.lane.b32.xlu0 %v593, 17
          %v607 = vpop.permute.xlu0 %606
          %608 = vrot.lane.b32.xlu0 %v594, 17
          %v609 = vpop.permute.xlu0 %608
          %v610 = vrot.slane %v601, 4
          %v611 = vrot.slane %v603, 4
          %v612 = vrot.slane %v605, 4
          %v613 = vrot.slane %v607, 4
          %v614 = vrot.slane %v609, 4
          %v615 = vsel %vm278, %v610, %v611
          %vm616 = vcmask 138240
          %v617 = vsel %vm616, %v601, %v615
          %v618 = vsel %vm278, %v611, %v612
          %v619 = vsel %vm616, %v603, %v618
          %v620 = vsel %vm278, %v612, %v613
          %v621 = vsel %vm616, %v605, %v620
          %v622 = vsel %vm278, %v613, %v614
          %v623 = vsel %vm616, %v607, %v622
          %628 = vst [vmem:[#allocation2 + $0x100] sm:$0xff] %v617
          %629 = vst [vmem:[#allocation2 + $0x108] sm:$0xff] %v619
          %630 = vst [vmem:[#allocation2 + $0x110] sm:$0xff] %v621
          %631 = vst [vmem:[#allocation2 + $0x118] sm:$0xff] %v623
        $region44: #{tpu_custom_call.1} parent=31 // pred_fallthru
          _
        %p632 = scmp.eq.s32.totalorder %s28, 1
        // Predicated region
        $region45: #{tpu_custom_call.1} parent=31 // pred_check
          %p633 = pneg %p632
        $region46: #{tpu_custom_call.1} parent=31 // pred_check_branch
          %635 = sbr.rel (%p633) target = $region48
        $region47: #{tpu_custom_call.1} parent=31 // pred_region
          %v636 = vld [vmem:[%s201 + $0x4] sm:$0xff]
          %v637 = vld [vmem:[%s201 + $0xc] sm:$0xff]
          %v638 = vld [vmem:[%s201 + $0x14] sm:$0xff]
          %v639 = vld [vmem:[%s201 + $0x1c] sm:$0xff]
          %v640 = vld [vmem:[%s201 + $0x24] sm:$0xf]
          %646 = vrot.lane.b32.xlu0 %v636, 67
          %v647 = vpop.permute.xlu0 %646
          %648 = vrot.lane.b32.xlu0 %v637, 67
          %v649 = vpop.permute.xlu0 %648
          %650 = vrot.lane.b32.xlu0 %v638, 67
          %v651 = vpop.permute.xlu0 %650
          %652 = vrot.lane.b32.xlu0 %v639, 67
          %v653 = vpop.permute.xlu0 %652
          %654 = vrot.lane.b32.xlu0 %v640, 67
          %v655 = vpop.permute.xlu0 %654
          %v656 = vrot.slane %v647, 4
          %v657 = vrot.slane %v649, 4
          %v658 = vrot.slane %v651, 4
          %v659 = vrot.slane %v653, 4
          %v660 = vrot.slane %v655, 4
          %vm661 = vcmask 1043456
          %v662 = vsel %vm661, %v656, %v657
          %vm663 = vcmask 547840
          %v664 = vsel %vm663, %v647, %v662
          %v665 = vsel %vm661, %v657, %v658
          %v666 = vsel %vm663, %v649, %v665
          %v667 = vsel %vm661, %v658, %v659
          %v668 = vsel %vm663, %v651, %v667
          %v669 = vsel %vm661, %v659, %v660
          %v670 = vsel %vm663, %v653, %v669
          %675 = vst [vmem:[#allocation2] sm:$0xff] %v664
          %676 = vst [vmem:[#allocation2 + $0x8] sm:$0xff] %v666
          %677 = vst [vmem:[#allocation2 + $0x10] sm:$0xff] %v668
          %678 = vst [vmem:[#allocation2 + $0x18] sm:$0xff] %v670
          %v679 = vld [vmem:[%s201 + $0x4] sm:$0xff]
          %v680 = vld [vmem:[%s201 + $0xc] sm:$0xff]
          %v681 = vld [vmem:[%s201 + $0x14] sm:$0xff]
          %v682 = vld [vmem:[%s201 + $0x1c] sm:$0xff]
          %v683 = vld [vmem:[%s201 + $0x24] sm:$0xf]
          %689 = vrot.lane.b32.xlu0 %v679, 66
          %v690 = vpop.permute.xlu0 %689
          %691 = vrot.lane.b32.xlu0 %v680, 66
          %v692 = vpop.permute.xlu0 %691
          %693 = vrot.lane.b32.xlu0 %v681, 66
          %v694 = vpop.permute.xlu0 %693
          %695 = vrot.lane.b32.xlu0 %v682, 66
          %v696 = vpop.permute.xlu0 %695
          %697 = vrot.lane.b32.xlu0 %v683, 66
          %v698 = vpop.permute.xlu0 %697
          %v699 = vrot.slane %v690, 4
          %v700 = vrot.slane %v692, 4
          %v701 = vrot.slane %v694, 4
          %v702 = vrot.slane %v696, 4
          %v703 = vrot.slane %v698, 4
          %v704 = vsel %vm661, %v699, %v700
          %vm705 = vcmask 539648
          %v706 = vsel %vm705, %v690, %v704
          %v707 = vsel %vm661, %v700, %v701
          %v708 = vsel %vm705, %v692, %v707
          %v709 = vsel %vm661, %v701, %v702
          %v710 = vsel %vm705, %v694, %v709
          %v711 = vsel %vm661, %v702, %v703
          %v712 = vsel %vm705, %v696, %v711
          %717 = vst [vmem:[#allocation2 + $0x20] sm:$0xff] %v706
          %718 = vst [vmem:[#allocation2 + $0x28] sm:$0xff] %v708
          %719 = vst [vmem:[#allocation2 + $0x30] sm:$0xff] %v710
          %720 = vst [vmem:[#allocation2 + $0x38] sm:$0xff] %v712
          %v721 = vld [vmem:[%s201 + $0x4] sm:$0xff]
          %v722 = vld [vmem:[%s201 + $0xc] sm:$0xff]
          %v723 = vld [vmem:[%s201 + $0x14] sm:$0xff]
          %v724 = vld [vmem:[%s201 + $0x1c] sm:$0xff]
          %v725 = vld [vmem:[%s201 + $0x24] sm:$0xf]
          %731 = vrot.lane.b32.xlu0 %v721, 65
          %v732 = vpop.permute.xlu0 %731
          %733 = vrot.lane.b32.xlu0 %v722, 65
          %v734 = vpop.permute.xlu0 %733
          %735 = vrot.lane.b32.xlu0 %v723, 65
          %v736 = vpop.permute.xlu0 %735
          %737 = vrot.lane.b32.xlu0 %v724, 65
          %v738 = vpop.permute.xlu0 %737
          %739 = vrot.lane.b32.xlu0 %v725, 65
          %v740 = vpop.permute.xlu0 %739
          %v741 = vrot.slane %v732, 4
          %v742 = vrot.slane %v734, 4
          %v743 = vrot.slane %v736, 4
          %v744 = vrot.slane %v738, 4
          %v745 = vrot.slane %v740, 4
          %v746 = vsel %vm661, %v741, %v742
          %vm747 = vcmask 531456
          %v748 = vsel %vm747, %v732, %v746
          %v749 = vsel %vm661, %v742, %v743
          %v750 = vsel %vm747, %v734, %v749
          %v751 = vsel %vm661, %v743, %v744
          %v752 = vsel %vm747, %v736, %v751
          %v753 = vsel %vm661, %v744, %v745
          %v754 = vsel %vm747, %v738, %v753
          %759 = vst [vmem:[#allocation2 + $0x40] sm:$0xff] %v748
          %760 = vst [vmem:[#allocation2 + $0x48] sm:$0xff] %v750
          %761 = vst [vmem:[#allocation2 + $0x50] sm:$0xff] %v752
          %762 = vst [vmem:[#allocation2 + $0x58] sm:$0xff] %v754
          %v763 = vld [vmem:[%s201 + $0x4] sm:$0xff]
          %v764 = vld [vmem:[%s201 + $0xc] sm:$0xff]
          %v765 = vld [vmem:[%s201 + $0x14] sm:$0xff]
          %v766 = vld [vmem:[%s201 + $0x1c] sm:$0xff]
          %v767 = vld [vmem:[%s201 + $0x24] sm:$0xf]
          %773 = vrot.lane.b32.xlu0 %v763, 57
          %v774 = vpop.permute.xlu0 %773
          %775 = vrot.lane.b32.xlu0 %v764, 57
          %v776 = vpop.permute.xlu0 %775
          %777 = vrot.lane.b32.xlu0 %v765, 57
          %v778 = vpop.permute.xlu0 %777
          %779 = vrot.lane.b32.xlu0 %v766, 57
          %v780 = vpop.permute.xlu0 %779
          %781 = vrot.lane.b32.xlu0 %v767, 57
          %v782 = vpop.permute.xlu0 %781
          %v783 = vrot.slane %v774, 4
          %v784 = vrot.slane %v776, 4
          %v785 = vrot.slane %v778, 4
          %v786 = vrot.slane %v780, 4
          %v787 = vrot.slane %v782, 4
          %v788 = vsel %vm661, %v783, %v784
          %vm789 = vcmask 465920
          %v790 = vsel %vm789, %v774, %v788
          %v791 = vsel %vm661, %v784, %v785
          %v792 = vsel %vm789, %v776, %v791
          %v793 = vsel %vm661, %v785, %v786
          %v794 = vsel %vm789, %v778, %v793
          %v795 = vsel %vm661, %v786, %v787
          %v796 = vsel %vm789, %v780, %v795
          %801 = vst [vmem:[#allocation2 + $0x60] sm:$0xff] %v790
          %802 = vst [vmem:[#allocation2 + $0x68] sm:$0xff] %v792
          %803 = vst [vmem:[#allocation2 + $0x70] sm:$0xff] %v794
          %804 = vst [vmem:[#allocation2 + $0x78] sm:$0xff] %v796
          %v805 = vld [vmem:[%s201 + $0x4] sm:$0xff]
          %v806 = vld [vmem:[%s201 + $0xc] sm:$0xff]
          %v807 = vld [vmem:[%s201 + $0x14] sm:$0xff]
          %v808 = vld [vmem:[%s201 + $0x1c] sm:$0xff]
          %v809 = vld [vmem:[%s201 + $0x24] sm:$0xf]
          %815 = vrot.lane.b32.xlu0 %v805, 56
          %v816 = vpop.permute.xlu0 %815
          %817 = vrot.lane.b32.xlu0 %v806, 56
          %v818 = vpop.permute.xlu0 %817
          %819 = vrot.lane.b32.xlu0 %v807, 56
          %v820 = vpop.permute.xlu0 %819
          %821 = vrot.lane.b32.xlu0 %v808, 56
          %v822 = vpop.permute.xlu0 %821
          %823 = vrot.lane.b32.xlu0 %v809, 56
          %v824 = vpop.permute.xlu0 %823
          %v825 = vrot.slane %v816, 4
          %v826 = vrot.slane %v818, 4
          %v827 = vrot.slane %v820, 4
          %v828 = vrot.slane %v822, 4
          %v829 = vrot.slane %v824, 4
          %v830 = vsel %vm661, %v825, %v826
          %vm831 = vcmask 457728
          %v832 = vsel %vm831, %v816, %v830
          %v833 = vsel %vm661, %v826, %v827
          %v834 = vsel %vm831, %v818, %v833
          %v835 = vsel %vm661, %v827, %v828
          %v836 = vsel %vm831, %v820, %v835
          %v837 = vsel %vm661, %v828, %v829
          %v838 = vsel %vm831, %v822, %v837
          %843 = vst [vmem:[#allocation2 + $0x80] sm:$0xff] %v832
          %844 = vst [vmem:[#allocation2 + $0x88] sm:$0xff] %v834
          %845 = vst [vmem:[#allocation2 + $0x90] sm:$0xff] %v836
          %846 = vst [vmem:[#allocation2 + $0x98] sm:$0xff] %v838
          %v847 = vld [vmem:[%s201 + $0x4] sm:$0xff]
          %v848 = vld [vmem:[%s201 + $0xc] sm:$0xff]
          %v849 = vld [vmem:[%s201 + $0x14] sm:$0xff]
          %v850 = vld [vmem:[%s201 + $0x1c] sm:$0xff]
          %v851 = vld [vmem:[%s201 + $0x24] sm:$0xf]
          %857 = vrot.lane.b32.xlu0 %v847, 55
          %v858 = vpop.permute.xlu0 %857
          %859 = vrot.lane.b32.xlu0 %v848, 55
          %v860 = vpop.permute.xlu0 %859
          %861 = vrot.lane.b32.xlu0 %v849, 55
          %v862 = vpop.permute.xlu0 %861
          %863 = vrot.lane.b32.xlu0 %v850, 55
          %v864 = vpop.permute.xlu0 %863
          %865 = vrot.lane.b32.xlu0 %v851, 55
          %v866 = vpop.permute.xlu0 %865
          %v867 = vrot.slane %v858, 4
          %v868 = vrot.slane %v860, 4
          %v869 = vrot.slane %v862, 4
          %v870 = vrot.slane %v864, 4
          %v871 = vrot.slane %v866, 4
          %v872 = vsel %vm661, %v867, %v868
          %vm873 = vcmask 449536
          %v874 = vsel %vm873, %v858, %v872
          %v875 = vsel %vm661, %v868, %v869
          %v876 = vsel %vm873, %v860, %v875
          %v877 = vsel %vm661, %v869, %v870
          %v878 = vsel %vm873, %v862, %v877
          %v879 = vsel %vm661, %v870, %v871
          %v880 = vsel %vm873, %v864, %v879
          %885 = vst [vmem:[#allocation2 + $0xa0] sm:$0xff] %v874
          %886 = vst [vmem:[#allocation2 + $0xa8] sm:$0xff] %v876
          %887 = vst [vmem:[#allocation2 + $0xb0] sm:$0xff] %v878
          %888 = vst [vmem:[#allocation2 + $0xb8] sm:$0xff] %v880
          %v889 = vld [vmem:[%s201 + $0x4] sm:$0xff]
          %v890 = vld [vmem:[%s201 + $0xc] sm:$0xff]
          %v891 = vld [vmem:[%s201 + $0x14] sm:$0xff]
          %v892 = vld [vmem:[%s201 + $0x1c] sm:$0xff]
          %v893 = vld [vmem:[%s201 + $0x24] sm:$0xf]
          %899 = vrot.lane.b32.xlu0 %v889, 47
          %v900 = vpop.permute.xlu0 %899
          %901 = vrot.lane.b32.xlu0 %v890, 47
          %v902 = vpop.permute.xlu0 %901
          %903 = vrot.lane.b32.xlu0 %v891, 47
          %v904 = vpop.permute.xlu0 %903
          %905 = vrot.lane.b32.xlu0 %v892, 47
          %v906 = vpop.permute.xlu0 %905
          %907 = vrot.lane.b32.xlu0 %v893, 47
          %v908 = vpop.permute.xlu0 %907
          %v909 = vrot.slane %v900, 4
          %v910 = vrot.slane %v902, 4
          %v911 = vrot.slane %v904, 4
          %v912 = vrot.slane %v906, 4
          %v913 = vrot.slane %v908, 4
          %v914 = vsel %vm661, %v909, %v910
          %vm915 = vcmask 384000
          %v916 = vsel %vm915, %v900, %v914
          %v917 = vsel %vm661, %v910, %v911
          %v918 = vsel %vm915, %v902, %v917
          %v919 = vsel %vm661, %v911, %v912
          %v920 = vsel %vm915, %v904, %v919
          %v921 = vsel %vm661, %v912, %v913
          %v922 = vsel %vm915, %v906, %v921
          %927 = vst [vmem:[#allocation2 + $0xc0] sm:$0xff] %v916
          %928 = vst [vmem:[#allocation2 + $0xc8] sm:$0xff] %v918
          %929 = vst [vmem:[#allocation2 + $0xd0] sm:$0xff] %v920
          %930 = vst [vmem:[#allocation2 + $0xd8] sm:$0xff] %v922
          %v931 = vld [vmem:[%s201 + $0x4] sm:$0xff]
          %v932 = vld [vmem:[%s201 + $0xc] sm:$0xff]
          %v933 = vld [vmem:[%s201 + $0x14] sm:$0xff]
          %v934 = vld [vmem:[%s201 + $0x1c] sm:$0xff]
          %v935 = vld [vmem:[%s201 + $0x24] sm:$0xf]
          %941 = vrot.lane.b32.xlu0 %v931, 46
          %v942 = vpop.permute.xlu0 %941
          %943 = vrot.lane.b32.xlu0 %v932, 46
          %v944 = vpop.permute.xlu0 %943
          %945 = vrot.lane.b32.xlu0 %v933, 46
          %v946 = vpop.permute.xlu0 %945
          %947 = vrot.lane.b32.xlu0 %v934, 46
          %v948 = vpop.permute.xlu0 %947
          %949 = vrot.lane.b32.xlu0 %v935, 46
          %v950 = vpop.permute.xlu0 %949
          %v951 = vrot.slane %v942, 4
          %v952 = vrot.slane %v944, 4
          %v953 = vrot.slane %v946, 4
          %v954 = vrot.slane %v948, 4
          %v955 = vrot.slane %v950, 4
          %v956 = vsel %vm661, %v951, %v952
          %vm957 = vcmask 375808
          %v958 = vsel %vm957, %v942, %v956
          %v959 = vsel %vm661, %v952, %v953
          %v960 = vsel %vm957, %v944, %v959
          %v961 = vsel %vm661, %v953, %v954
          %v962 = vsel %vm957, %v946, %v961
          %v963 = vsel %vm661, %v954, %v955
          %v964 = vsel %vm957, %v948, %v963
          %969 = vst [vmem:[#allocation2 + $0xe0] sm:$0xff] %v958
          %970 = vst [vmem:[#allocation2 + $0xe8] sm:$0xff] %v960
          %971 = vst [vmem:[#allocation2 + $0xf0] sm:$0xff] %v962
          %972 = vst [vmem:[#allocation2 + $0xf8] sm:$0xff] %v964
          %v973 = vld [vmem:[%s201 + $0x4] sm:$0xff]
          %v974 = vld [vmem:[%s201 + $0xc] sm:$0xff]
          %v975 = vld [vmem:[%s201 + $0x14] sm:$0xff]
          %v976 = vld [vmem:[%s201 + $0x1c] sm:$0xff]
          %v977 = vld [vmem:[%s201 + $0x24] sm:$0xf]
          %983 = vrot.lane.b32.xlu0 %v973, 45
          %v984 = vpop.permute.xlu0 %983
          %985 = vrot.lane.b32.xlu0 %v974, 45
          %v986 = vpop.permute.xlu0 %985
          %987 = vrot.lane.b32.xlu0 %v975, 45
          %v988 = vpop.permute.xlu0 %987
          %989 = vrot.lane.b32.xlu0 %v976, 45
          %v990 = vpop.permute.xlu0 %989
          %991 = vrot.lane.b32.xlu0 %v977, 45
          %v992 = vpop.permute.xlu0 %991
          %v993 = vrot.slane %v984, 4
          %v994 = vrot.slane %v986, 4
          %v995 = vrot.slane %v988, 4
          %v996 = vrot.slane %v990, 4
          %v997 = vrot.slane %v992, 4
          %v998 = vsel %vm661, %v993, %v994
          %vm999 = vcmask 367616
          %v1000 = vsel %vm999, %v984, %v998
          %v1001 = vsel %vm661, %v994, %v995
          %v1002 = vsel %vm999, %v986, %v1001
          %v1003 = vsel %vm661, %v995, %v996
          %v1004 = vsel %vm999, %v988, %v1003
          %v1005 = vsel %vm661, %v996, %v997
          %v1006 = vsel %vm999, %v990, %v1005
          %1011 = vst [vmem:[#allocation2 + $0x100] sm:$0xff] %v1000
          %1012 = vst [vmem:[#allocation2 + $0x108] sm:$0xff] %v1002
          %1013 = vst [vmem:[#allocation2 + $0x110] sm:$0xff] %v1004
          %1014 = vst [vmem:[#allocation2 + $0x118] sm:$0xff] %v1006
        $region48: #{tpu_custom_call.1} parent=31 // pred_fallthru
          _
        %p1015 = scmp.eq.s32.totalorder %s28, 2
        // Predicated region
        $region49: #{tpu_custom_call.1} parent=31 // pred_check
          %p1016 = pneg %p1015
        $region50: #{tpu_custom_call.1} parent=31 // pred_check_branch
          %1018 = sbr.rel (%p1016) target = $region52
        $region51: #{tpu_custom_call.1} parent=31 // pred_region
          %v1019 = vld [vmem:[%s201 + $0x8] sm:$0xff]
          %v1020 = vld [vmem:[%s201 + $0x10] sm:$0xff]
          %v1021 = vld [vmem:[%s201 + $0x18] sm:$0xff]
          %v1022 = vld [vmem:[%s201 + $0x20] sm:$0xff]
          %v1023 = vld [vmem:[%s201 + $0x28] sm:$0xf]
          %1029 = vrot.lane.b32.xlu0 %v1019, 95
          %v1030 = vpop.permute.xlu0 %1029
          %1031 = vrot.lane.b32.xlu0 %v1020, 95
          %v1032 = vpop.permute.xlu0 %1031
          %1033 = vrot.lane.b32.xlu0 %v1021, 95
          %v1034 = vpop.permute.xlu0 %1033
          %1035 = vrot.lane.b32.xlu0 %v1022, 95
          %v1036 = vpop.permute.xlu0 %1035
          %1037 = vrot.lane.b32.xlu0 %v1023, 95
          %v1038 = vpop.permute.xlu0 %1037
          %v1039 = vrot.slane %v1030, 4
          %v1040 = vrot.slane %v1032, 4
          %v1041 = vrot.slane %v1034, 4
          %v1042 = vrot.slane %v1036, 4
          %v1043 = vrot.slane %v1038, 4
          %vm1044 = vcmask 1043456
          %v1045 = vsel %vm1044, %v1039, %v1040
          %vm1046 = vcmask 777216
          %v1047 = vsel %vm1046, %v1030, %v1045
          %v1048 = vsel %vm1044, %v1040, %v1041
          %v1049 = vsel %vm1046, %v1032, %v1048
          %v1050 = vsel %vm1044, %v1041, %v1042
          %v1051 = vsel %vm1046, %v1034, %v1050
          %v1052 = vsel %vm1044, %v1042, %v1043
          %v1053 = vsel %vm1046, %v1036, %v1052
          %1058 = vst [vmem:[#allocation2] sm:$0xff] %v1047
          %1059 = vst [vmem:[#allocation2 + $0x8] sm:$0xff] %v1049
          %1060 = vst [vmem:[#allocation2 + $0x10] sm:$0xff] %v1051
          %1061 = vst [vmem:[#allocation2 + $0x18] sm:$0xff] %v1053
          %v1062 = vld [vmem:[%s201 + $0x8] sm:$0xff]
          %v1063 = vld [vmem:[%s201 + $0x10] sm:$0xff]
          %v1064 = vld [vmem:[%s201 + $0x18] sm:$0xff]
          %v1065 = vld [vmem:[%s201 + $0x20] sm:$0xff]
          %v1066 = vld [vmem:[%s201 + $0x28] sm:$0xf]
          %1072 = vrot.lane.b32.xlu0 %v1062, 94
          %v1073 = vpop.permute.xlu0 %1072
          %1074 = vrot.lane.b32.xlu0 %v1063, 94
          %v1075 = vpop.permute.xlu0 %1074
          %1076 = vrot.lane.b32.xlu0 %v1064, 94
          %v1077 = vpop.permute.xlu0 %1076
          %1078 = vrot.lane.b32.xlu0 %v1065, 94
          %v1079 = vpop.permute.xlu0 %1078
          %1080 = vrot.lane.b32.xlu0 %v1066, 94
          %v1081 = vpop.permute.xlu0 %1080
          %v1082 = vrot.slane %v1073, 4
          %v1083 = vrot.slane %v1075, 4
          %v1084 = vrot.slane %v1077, 4
          %v1085 = vrot.slane %v1079, 4
          %v1086 = vrot.slane %v1081, 4
          %v1087 = vsel %vm1044, %v1082, %v1083
          %vm1088 = vcmask 769024
          %v1089 = vsel %vm1088, %v1073, %v1087
          %v1090 = vsel %vm1044, %v1083, %v1084
          %v1091 = vsel %vm1088, %v1075, %v1090
          %v1092 = vsel %vm1044, %v1084, %v1085
          %v1093 = vsel %vm1088, %v1077, %v1092
          %v1094 = vsel %vm1044, %v1085, %v1086
          %v1095 = vsel %vm1088, %v1079, %v1094
          %1100 = vst [vmem:[#allocation2 + $0x20] sm:$0xff] %v1089
          %1101 = vst [vmem:[#allocation2 + $0x28] sm:$0xff] %v1091
          %1102 = vst [vmem:[#allocation2 + $0x30] sm:$0xff] %v1093
          %1103 = vst [vmem:[#allocation2 + $0x38] sm:$0xff] %v1095
          %v1104 = vld [vmem:[%s201 + $0x8] sm:$0xff]
          %v1105 = vld [vmem:[%s201 + $0x10] sm:$0xff]
          %v1106 = vld [vmem:[%s201 + $0x18] sm:$0xff]
          %v1107 = vld [vmem:[%s201 + $0x20] sm:$0xff]
          %v1108 = vld [vmem:[%s201 + $0x28] sm:$0xf]
          %1114 = vrot.lane.b32.xlu0 %v1104, 93
          %v1115 = vpop.permute.xlu0 %1114
          %1116 = vrot.lane.b32.xlu0 %v1105, 93
          %v1117 = vpop.permute.xlu0 %1116
          %1118 = vrot.lane.b32.xlu0 %v1106, 93
          %v1119 = vpop.permute.xlu0 %1118
          %1120 = vrot.lane.b32.xlu0 %v1107, 93
          %v1121 = vpop.permute.xlu0 %1120
          %1122 = vrot.lane.b32.xlu0 %v1108, 93
          %v1123 = vpop.permute.xlu0 %1122
          %v1124 = vrot.slane %v1115, 4
          %v1125 = vrot.slane %v1117, 4
          %v1126 = vrot.slane %v1119, 4
          %v1127 = vrot.slane %v1121, 4
          %v1128 = vrot.slane %v1123, 4
          %v1129 = vsel %vm1044, %v1124, %v1125
          %vm1130 = vcmask 760832
          %v1131 = vsel %vm1130, %v1115, %v1129
          %v1132 = vsel %vm1044, %v1125, %v1126
          %v1133 = vsel %vm1130, %v1117, %v1132
          %v1134 = vsel %vm1044, %v1126, %v1127
          %v1135 = vsel %vm1130, %v1119, %v1134
          %v1136 = vsel %vm1044, %v1127, %v1128
          %v1137 = vsel %vm1130, %v1121, %v1136
          %1142 = vst [vmem:[#allocation2 + $0x40] sm:$0xff] %v1131
          %1143 = vst [vmem:[#allocation2 + $0x48] sm:$0xff] %v1133
          %1144 = vst [vmem:[#allocation2 + $0x50] sm:$0xff] %v1135
          %1145 = vst [vmem:[#allocation2 + $0x58] sm:$0xff] %v1137
          %v1146 = vld [vmem:[%s201 + $0x8] sm:$0xff]
          %v1147 = vld [vmem:[%s201 + $0x10] sm:$0xff]
          %v1148 = vld [vmem:[%s201 + $0x18] sm:$0xff]
          %v1149 = vld [vmem:[%s201 + $0x20] sm:$0xff]
          %v1150 = vld [vmem:[%s201 + $0x28] sm:$0xf]
          %1156 = vrot.lane.b32.xlu0 %v1146, 85
          %v1157 = vpop.permute.xlu0 %1156
          %1158 = vrot.lane.b32.xlu0 %v1147, 85
          %v1159 = vpop.permute.xlu0 %1158
          %1160 = vrot.lane.b32.xlu0 %v1148, 85
          %v1161 = vpop.permute.xlu0 %1160
          %1162 = vrot.lane.b32.xlu0 %v1149, 85
          %v1163 = vpop.permute.xlu0 %1162
          %1164 = vrot.lane.b32.xlu0 %v1150, 85
          %v1165 = vpop.permute.xlu0 %1164
          %v1166 = vrot.slane %v1157, 4
          %v1167 = vrot.slane %v1159, 4
          %v1168 = vrot.slane %v1161, 4
          %v1169 = vrot.slane %v1163, 4
          %v1170 = vrot.slane %v1165, 4
          %v1171 = vsel %vm1044, %v1166, %v1167
          %vm1172 = vcmask 695296
          %v1173 = vsel %vm1172, %v1157, %v1171
          %v1174 = vsel %vm1044, %v1167, %v1168
          %v1175 = vsel %vm1172, %v1159, %v1174
          %v1176 = vsel %vm1044, %v1168, %v1169
          %v1177 = vsel %vm1172, %v1161, %v1176
          %v1178 = vsel %vm1044, %v1169, %v1170
          %v1179 = vsel %vm1172, %v1163, %v1178
          %1184 = vst [vmem:[#allocation2 + $0x60] sm:$0xff] %v1173
          %1185 = vst [vmem:[#allocation2 + $0x68] sm:$0xff] %v1175
          %1186 = vst [vmem:[#allocation2 + $0x70] sm:$0xff] %v1177
          %1187 = vst [vmem:[#allocation2 + $0x78] sm:$0xff] %v1179
          %v1188 = vld [vmem:[%s201 + $0x8] sm:$0xff]
          %v1189 = vld [vmem:[%s201 + $0x10] sm:$0xff]
          %v1190 = vld [vmem:[%s201 + $0x18] sm:$0xff]
          %v1191 = vld [vmem:[%s201 + $0x20] sm:$0xff]
          %v1192 = vld [vmem:[%s201 + $0x28] sm:$0xf]
          %1198 = vrot.lane.b32.xlu0 %v1188, 84
          %v1199 = vpop.permute.xlu0 %1198
          %1200 = vrot.lane.b32.xlu0 %v1189, 84
          %v1201 = vpop.permute.xlu0 %1200
          %1202 = vrot.lane.b32.xlu0 %v1190, 84
          %v1203 = vpop.permute.xlu0 %1202
          %1204 = vrot.lane.b32.xlu0 %v1191, 84
          %v1205 = vpop.permute.xlu0 %1204
          %1206 = vrot.lane.b32.xlu0 %v1192, 84
          %v1207 = vpop.permute.xlu0 %1206
          %v1208 = vrot.slane %v1199, 4
          %v1209 = vrot.slane %v1201, 4
          %v1210 = vrot.slane %v1203, 4
          %v1211 = vrot.slane %v1205, 4
          %v1212 = vrot.slane %v1207, 4
          %v1213 = vsel %vm1044, %v1208, %v1209
          %vm1214 = vcmask 687104
          %v1215 = vsel %vm1214, %v1199, %v1213
          %v1216 = vsel %vm1044, %v1209, %v1210
          %v1217 = vsel %vm1214, %v1201, %v1216
          %v1218 = vsel %vm1044, %v1210, %v1211
          %v1219 = vsel %vm1214, %v1203, %v1218
          %v1220 = vsel %vm1044, %v1211, %v1212
          %v1221 = vsel %vm1214, %v1205, %v1220
          %1226 = vst [vmem:[#allocation2 + $0x80] sm:$0xff] %v1215
          %1227 = vst [vmem:[#allocation2 + $0x88] sm:$0xff] %v1217
          %1228 = vst [vmem:[#allocation2 + $0x90] sm:$0xff] %v1219
          %1229 = vst [vmem:[#allocation2 + $0x98] sm:$0xff] %v1221
          %v1230 = vld [vmem:[%s201 + $0x8] sm:$0xff]
          %v1231 = vld [vmem:[%s201 + $0x10] sm:$0xff]
          %v1232 = vld [vmem:[%s201 + $0x18] sm:$0xff]
          %v1233 = vld [vmem:[%s201 + $0x20] sm:$0xff]
          %v1234 = vld [vmem:[%s201 + $0x28] sm:$0xf]
          %1240 = vrot.lane.b32.xlu0 %v1230, 83
          %v1241 = vpop.permute.xlu0 %1240
          %1242 = vrot.lane.b32.xlu0 %v1231, 83
          %v1243 = vpop.permute.xlu0 %1242
          %1244 = vrot.lane.b32.xlu0 %v1232, 83
          %v1245 = vpop.permute.xlu0 %1244
          %1246 = vrot.lane.b32.xlu0 %v1233, 83
          %v1247 = vpop.permute.xlu0 %1246
          %1248 = vrot.lane.b32.xlu0 %v1234, 83
          %v1249 = vpop.permute.xlu0 %1248
          %v1250 = vrot.slane %v1241, 4
          %v1251 = vrot.slane %v1243, 4
          %v1252 = vrot.slane %v1245, 4
          %v1253 = vrot.slane %v1247, 4
          %v1254 = vrot.slane %v1249, 4
          %v1255 = vsel %vm1044, %v1250, %v1251
          %vm1256 = vcmask 678912
          %v1257 = vsel %vm1256, %v1241, %v1255
          %v1258 = vsel %vm1044, %v1251, %v1252
          %v1259 = vsel %vm1256, %v1243, %v1258
          %v1260 = vsel %vm1044, %v1252, %v1253
          %v1261 = vsel %vm1256, %v1245, %v1260
          %v1262 = vsel %vm1044, %v1253, %v1254
          %v1263 = vsel %vm1256, %v1247, %v1262
          %1268 = vst [vmem:[#allocation2 + $0xa0] sm:$0xff] %v1257
          %1269 = vst [vmem:[#allocation2 + $0xa8] sm:$0xff] %v1259
          %1270 = vst [vmem:[#allocation2 + $0xb0] sm:$0xff] %v1261
          %1271 = vst [vmem:[#allocation2 + $0xb8] sm:$0xff] %v1263
          %v1272 = vld [vmem:[%s201 + $0x8] sm:$0xff]
          %v1273 = vld [vmem:[%s201 + $0x10] sm:$0xff]
          %v1274 = vld [vmem:[%s201 + $0x18] sm:$0xff]
          %v1275 = vld [vmem:[%s201 + $0x20] sm:$0xff]
          %v1276 = vld [vmem:[%s201 + $0x28] sm:$0xf]
          %1282 = vrot.lane.b32.xlu0 %v1272, 75
          %v1283 = vpop.permute.xlu0 %1282
          %1284 = vrot.lane.b32.xlu0 %v1273, 75
          %v1285 = vpop.permute.xlu0 %1284
          %1286 = vrot.lane.b32.xlu0 %v1274, 75
          %v1287 = vpop.permute.xlu0 %1286
          %1288 = vrot.lane.b32.xlu0 %v1275, 75
          %v1289 = vpop.permute.xlu0 %1288
          %1290 = vrot.lane.b32.xlu0 %v1276, 75
          %v1291 = vpop.permute.xlu0 %1290
          %v1292 = vrot.slane %v1283, 4
          %v1293 = vrot.slane %v1285, 4
          %v1294 = vrot.slane %v1287, 4
          %v1295 = vrot.slane %v1289, 4
          %v1296 = vrot.slane %v1291, 4
          %v1297 = vsel %vm1044, %v1292, %v1293
          %vm1298 = vcmask 613376
          %v1299 = vsel %vm1298, %v1283, %v1297
          %v1300 = vsel %vm1044, %v1293, %v1294
          %v1301 = vsel %vm1298, %v1285, %v1300
          %v1302 = vsel %vm1044, %v1294, %v1295
          %v1303 = vsel %vm1298, %v1287, %v1302
          %v1304 = vsel %vm1044, %v1295, %v1296
          %v1305 = vsel %vm1298, %v1289, %v1304
          %1310 = vst [vmem:[#allocation2 + $0xc0] sm:$0xff] %v1299
          %1311 = vst [vmem:[#allocation2 + $0xc8] sm:$0xff] %v1301
          %1312 = vst [vmem:[#allocation2 + $0xd0] sm:$0xff] %v1303
          %1313 = vst [vmem:[#allocation2 + $0xd8] sm:$0xff] %v1305
          %v1314 = vld [vmem:[%s201 + $0x8] sm:$0xff]
          %v1315 = vld [vmem:[%s201 + $0x10] sm:$0xff]
          %v1316 = vld [vmem:[%s201 + $0x18] sm:$0xff]
          %v1317 = vld [vmem:[%s201 + $0x20] sm:$0xff]
          %v1318 = vld [vmem:[%s201 + $0x28] sm:$0xf]
          %1324 = vrot.lane.b32.xlu0 %v1314, 74
          %v1325 = vpop.permute.xlu0 %1324
          %1326 = vrot.lane.b32.xlu0 %v1315, 74
          %v1327 = vpop.permute.xlu0 %1326
          %1328 = vrot.lane.b32.xlu0 %v1316, 74
          %v1329 = vpop.permute.xlu0 %1328
          %1330 = vrot.lane.b32.xlu0 %v1317, 74
          %v1331 = vpop.permute.xlu0 %1330
          %1332 = vrot.lane.b32.xlu0 %v1318, 74
          %v1333 = vpop.permute.xlu0 %1332
          %v1334 = vrot.slane %v1325, 4
          %v1335 = vrot.slane %v1327, 4
          %v1336 = vrot.slane %v1329, 4
          %v1337 = vrot.slane %v1331, 4
          %v1338 = vrot.slane %v1333, 4
          %v1339 = vsel %vm1044, %v1334, %v1335
          %vm1340 = vcmask 605184
          %v1341 = vsel %vm1340, %v1325, %v1339
          %v1342 = vsel %vm1044, %v1335, %v1336
          %v1343 = vsel %vm1340, %v1327, %v1342
          %v1344 = vsel %vm1044, %v1336, %v1337
          %v1345 = vsel %vm1340, %v1329, %v1344
          %v1346 = vsel %vm1044, %v1337, %v1338
          %v1347 = vsel %vm1340, %v1331, %v1346
          %1352 = vst [vmem:[#allocation2 + $0xe0] sm:$0xff] %v1341
          %1353 = vst [vmem:[#allocation2 + $0xe8] sm:$0xff] %v1343
          %1354 = vst [vmem:[#allocation2 + $0xf0] sm:$0xff] %v1345
          %1355 = vst [vmem:[#allocation2 + $0xf8] sm:$0xff] %v1347
          %v1356 = vld [vmem:[%s201 + $0x8] sm:$0xff]
          %v1357 = vld [vmem:[%s201 + $0x10] sm:$0xff]
          %v1358 = vld [vmem:[%s201 + $0x18] sm:$0xff]
          %v1359 = vld [vmem:[%s201 + $0x20] sm:$0xff]
          %v1360 = vld [vmem:[%s201 + $0x28] sm:$0xf]
          %1366 = vrot.lane.b32.xlu0 %v1356, 73
          %v1367 = vpop.permute.xlu0 %1366
          %1368 = vrot.lane.b32.xlu0 %v1357, 73
          %v1369 = vpop.permute.xlu0 %1368
          %1370 = vrot.lane.b32.xlu0 %v1358, 73
          %v1371 = vpop.permute.xlu0 %1370
          %1372 = vrot.lane.b32.xlu0 %v1359, 73
          %v1373 = vpop.permute.xlu0 %1372
          %1374 = vrot.lane.b32.xlu0 %v1360, 73
          %v1375 = vpop.permute.xlu0 %1374
          %v1376 = vrot.slane %v1367, 4
          %v1377 = vrot.slane %v1369, 4
          %v1378 = vrot.slane %v1371, 4
          %v1379 = vrot.slane %v1373, 4
          %v1380 = vrot.slane %v1375, 4
          %v1381 = vsel %vm1044, %v1376, %v1377
          %vm1382 = vcmask 596992
          %v1383 = vsel %vm1382, %v1367, %v1381
          %v1384 = vsel %vm1044, %v1377, %v1378
          %v1385 = vsel %vm1382, %v1369, %v1384
          %v1386 = vsel %vm1044, %v1378, %v1379
          %v1387 = vsel %vm1382, %v1371, %v1386
          %v1388 = vsel %vm1044, %v1379, %v1380
          %v1389 = vsel %vm1382, %v1373, %v1388
          %1394 = vst [vmem:[#allocation2 + $0x100] sm:$0xff] %v1383
          %1395 = vst [vmem:[#allocation2 + $0x108] sm:$0xff] %v1385
          %1396 = vst [vmem:[#allocation2 + $0x110] sm:$0xff] %v1387
          %1397 = vst [vmem:[#allocation2 + $0x118] sm:$0xff] %v1389
        $region52: #{tpu_custom_call.1} parent=31 // pred_fallthru
          _
        %v1398 = vld [vmem:[#allocation3] sm:$0xff]
        %v1399 = vld [vmem:[#allocation3 + $0x8] sm:$0xff]
        %v1400 = vld [vmem:[#allocation3 + $0x10] sm:$0xff]
        %v1401 = vld [vmem:[#allocation3 + $0x18] sm:$0xff]
        %v1402 = vld [vmem:[#allocation3 + $0x20] sm:$0xff]
        %v1403 = vld [vmem:[#allocation3 + $0x28] sm:$0xff]
        %v1404 = vld [vmem:[#allocation3 + $0x30] sm:$0xff]
        %v1405 = vld [vmem:[#allocation3 + $0x38] sm:$0xff]
        %v1406 = vld [vmem:[%s211] sm:$0xf]
        %v1407 = vld [vmem:[#allocation2] sm:$0xff]
        %v1408 = vld [vmem:[#allocation2 + $0x8] sm:$0xff]
        %v1409 = vld [vmem:[#allocation2 + $0x10] sm:$0xff]
        %v1410 = vld [vmem:[#allocation2 + $0x18] sm:$0xff]
        %v1411 = vld [vmem:[#allocation2 + $0x20] sm:$0xff]
        %v1412 = vld [vmem:[#allocation2 + $0x28] sm:$0xff]
        %v1413 = vld [vmem:[#allocation2 + $0x30] sm:$0xff]
        %v1414 = vld [vmem:[#allocation2 + $0x38] sm:$0xff]
        %v1415 = vld [vmem:[#allocation2 + $0x40] sm:$0xff]
        %v1416 = vld [vmem:[#allocation2 + $0x48] sm:$0xff]
        %v1417 = vld [vmem:[#allocation2 + $0x50] sm:$0xff]
        %v1418 = vld [vmem:[#allocation2 + $0x58] sm:$0xff]
        %v1419 = vld [vmem:[#allocation2 + $0x60] sm:$0xff]
        %v1420 = vld [vmem:[#allocation2 + $0x68] sm:$0xff]
        %v1421 = vld [vmem:[#allocation2 + $0x70] sm:$0xff]
        %v1422 = vld [vmem:[#allocation2 + $0x78] sm:$0xff]
        %v1423 = vld [vmem:[#allocation2 + $0x80] sm:$0xff]
        %v1424 = vld [vmem:[#allocation2 + $0x88] sm:$0xff]
        %v1425 = vld [vmem:[#allocation2 + $0x90] sm:$0xff]
        %v1426 = vld [vmem:[#allocation2 + $0x98] sm:$0xff]
        %v1427 = vld [vmem:[#allocation2 + $0xa0] sm:$0xff]
        %v1428 = vld [vmem:[#allocation2 + $0xa8] sm:$0xff]
        %v1429 = vld [vmem:[#allocation2 + $0xb0] sm:$0xff]
        %v1430 = vld [vmem:[#allocation2 + $0xb8] sm:$0xff]
        %v1431 = vld [vmem:[#allocation2 + $0xc0] sm:$0xff]
        %v1432 = vld [vmem:[#allocation2 + $0xc8] sm:$0xff]
        %v1433 = vld [vmem:[#allocation2 + $0xd0] sm:$0xff]
        %v1434 = vld [vmem:[#allocation2 + $0xd8] sm:$0xff]
        %v1435 = vld [vmem:[#allocation2 + $0xe0] sm:$0xff]
        %v1436 = vld [vmem:[#allocation2 + $0xe8] sm:$0xff]
        %v1437 = vld [vmem:[#allocation2 + $0xf0] sm:$0xff]
        %v1438 = vld [vmem:[#allocation2 + $0xf8] sm:$0xff]
        %v1439 = vld [vmem:[#allocation2 + $0x100] sm:$0xff]
        %v1440 = vld [vmem:[#allocation2 + $0x108] sm:$0xff]
        %v1441 = vld [vmem:[#allocation2 + $0x110] sm:$0xff]
        %v1442 = vld [vmem:[#allocation2 + $0x118] sm:$0xff]
        %v1479 = vunpack.c.l.b16 %v1407
        %v1480 = vunpack.c.h.b16 %v1407
        %v1481 = vunpack.c.l.b16 %v1408
        %v1482 = vunpack.c.h.b16 %v1408
        %v1483 = vunpack.c.l.b16 %v1409
        %v1484 = vunpack.c.h.b16 %v1409
        %v1485 = vunpack.c.l.b16 %v1410
        %v1486 = vunpack.c.h.b16 %v1410
        %v1487 = vunpack.c.l.b16 %v1411
        %v1488 = vunpack.c.h.b16 %v1411
        %v1489 = vunpack.c.l.b16 %v1412
        %v1490 = vunpack.c.h.b16 %v1412
        %v1491 = vunpack.c.l.b16 %v1413
        %v1492 = vunpack.c.h.b16 %v1413
        %v1493 = vunpack.c.l.b16 %v1414
        %v1494 = vunpack.c.h.b16 %v1414
        %v1495 = vunpack.c.l.b16 %v1415
        %v1496 = vunpack.c.h.b16 %v1415
        %v1497 = vunpack.c.l.b16 %v1416
        %v1498 = vunpack.c.h.b16 %v1416
        %v1499 = vunpack.c.l.b16 %v1417
        %v1500 = vunpack.c.h.b16 %v1417
        %v1501 = vunpack.c.l.b16 %v1418
        %v1502 = vunpack.c.h.b16 %v1418
        %v1503 = vunpack.c.l.b16 %v1419
        %v1504 = vunpack.c.h.b16 %v1419
        %v1505 = vunpack.c.l.b16 %v1420
        %v1506 = vunpack.c.h.b16 %v1420
        %v1507 = vunpack.c.l.b16 %v1421
        %v1508 = vunpack.c.h.b16 %v1421
        %v1509 = vunpack.c.l.b16 %v1422
        %v1510 = vunpack.c.h.b16 %v1422
        %v1511 = vunpack.c.l.b16 %v1423
        %v1512 = vunpack.c.h.b16 %v1423
        %v1513 = vunpack.c.l.b16 %v1424
        %v1514 = vunpack.c.h.b16 %v1424
        %v1515 = vunpack.c.l.b16 %v1425
        %v1516 = vunpack.c.h.b16 %v1425
        %v1517 = vunpack.c.l.b16 %v1426
        %v1518 = vunpack.c.h.b16 %v1426
        %v1519 = vunpack.c.l.b16 %v1427
        %v1520 = vunpack.c.h.b16 %v1427
        %v1521 = vunpack.c.l.b16 %v1428
        %v1522 = vunpack.c.h.b16 %v1428
        %v1523 = vunpack.c.l.b16 %v1429
        %v1524 = vunpack.c.h.b16 %v1429
        %v1525 = vunpack.c.l.b16 %v1430
        %v1526 = vunpack.c.h.b16 %v1430
        %v1527 = vunpack.c.l.b16 %v1431
        %v1528 = vunpack.c.h.b16 %v1431
        %v1529 = vunpack.c.l.b16 %v1432
        %v1530 = vunpack.c.h.b16 %v1432
        %v1531 = vunpack.c.l.b16 %v1433
        %v1532 = vunpack.c.h.b16 %v1433
        %v1533 = vunpack.c.l.b16 %v1434
        %v1534 = vunpack.c.h.b16 %v1434
        %v1535 = vunpack.c.l.b16 %v1435
        %v1536 = vunpack.c.h.b16 %v1435
        %v1537 = vunpack.c.l.b16 %v1436
        %v1538 = vunpack.c.h.b16 %v1436
        %v1539 = vunpack.c.l.b16 %v1437
        %v1540 = vunpack.c.h.b16 %v1437
        %v1541 = vunpack.c.l.b16 %v1438
        %v1542 = vunpack.c.h.b16 %v1438
        %v1543 = vunpack.c.l.b16 %v1439
        %v1544 = vunpack.c.h.b16 %v1439
        %v1545 = vunpack.c.l.b16 %v1440
        %v1546 = vunpack.c.h.b16 %v1440
        %v1547 = vunpack.c.l.b16 %v1441
        %v1548 = vunpack.c.h.b16 %v1441
        %v1549 = vunpack.c.l.b16 %v1442
        %v1550 = vunpack.c.h.b16 %v1442
        %v1551 = vpack.c.b16 %v1487, %v1479
        %v1552 = vpack.c.b16 %v1488, %v1480
        %v1553 = vpack.c.b16 %v1489, %v1481
        %v1554 = vpack.c.b16 %v1490, %v1482
        %v1555 = vpack.c.b16 %v1491, %v1483
        %v1556 = vpack.c.b16 %v1492, %v1484
        %v1557 = vpack.c.b16 %v1493, %v1485
        %v1558 = vpack.c.b16 %v1494, %v1486
        %v1559 = vpack.c.b16 %v1503, %v1495
        %v1560 = vpack.c.b16 %v1504, %v1496
        %v1561 = vpack.c.b16 %v1505, %v1497
        %v1562 = vpack.c.b16 %v1506, %v1498
        %v1563 = vpack.c.b16 %v1507, %v1499
        %v1564 = vpack.c.b16 %v1508, %v1500
        %v1565 = vpack.c.b16 %v1509, %v1501
        %v1566 = vpack.c.b16 %v1510, %v1502
        %v1567 = vpack.c.b16 %v1519, %v1511
        %v1568 = vpack.c.b16 %v1520, %v1512
        %v1569 = vpack.c.b16 %v1521, %v1513
        %v1570 = vpack.c.b16 %v1522, %v1514
        %v1571 = vpack.c.b16 %v1523, %v1515
        %v1572 = vpack.c.b16 %v1524, %v1516
        %v1573 = vpack.c.b16 %v1525, %v1517
        %v1574 = vpack.c.b16 %v1526, %v1518
        %v1575 = vpack.c.b16 %v1535, %v1527
        %v1576 = vpack.c.b16 %v1536, %v1528
        %v1577 = vpack.c.b16 %v1537, %v1529
        %v1578 = vpack.c.b16 %v1538, %v1530
        %v1579 = vpack.c.b16 %v1539, %v1531
        %v1580 = vpack.c.b16 %v1540, %v1532
        %v1581 = vpack.c.b16 %v1541, %v1533
        %v1582 = vpack.c.b16 %v1542, %v1534
        %v1583 = vpack.c.b16 %v1543, %v1543
        %v1584 = vpack.c.b16 %v1544, %v1544
        %v1585 = vpack.c.b16 %v1545, %v1545
        %v1586 = vpack.c.b16 %v1546, %v1546
        %v1587 = vpack.c.b16 %v1547, %v1547
        %v1588 = vpack.c.b16 %v1548, %v1548
        %v1589 = vpack.c.b16 %v1549, %v1549
        %v1590 = vpack.c.b16 %v1550, %v1550
        %vm1623 = vcmask 588800
        %v1625 = vsel %vm1623, %v1406, 0
        %vm1627 = vcmask 1043456
        %v1629 = vsel %vm1627, %v1583, 0
        %v1632 = vsel %vm1627, %v1584, 0
        %v1635 = vsel %vm1627, %v1585, 0
        %v1638 = vsel %vm1627, %v1586, 0
        %v1641 = vsel %vm1627, %v1587, 0
        %v1644 = vsel %vm1627, %v1588, 0
        %v1647 = vsel %vm1627, %v1589, 0
        %v1650 = vsel %vm1627, %v1590, 0
        %1652 = vmatpush.bf16.msra.mxu0 0
        %1653 = vmatpush.bf16.msra.mxu0 0
        %1654 = vmatpush.bf16.msra.mxu0 0
        %1655 = vmatpush.bf16.msra.mxu0 %v1629
        %1656 = vmatpush.bf16.msra.mxu0 %v1575
        %1657 = vmatpush.bf16.msra.mxu0 %v1567
        %1658 = vmatpush.bf16.msra.mxu0 %v1559
        %1659 = vmatpush.bf16.msra.mxu0 %v1551
        %1660 = vmatmul.bf16.gmra.mxu0 %v1625
        %v1661 = vpop.f32.mrf.mxu0
        %v1662 = vadd.f32 0.0, %v1661
        %v1663 = vpop.f32.mrf.mxu0
        %1664 = vdwg.mxu0
        %1665 = vmatpush.bf16.msra.mxu0 0
        %1666 = vmatpush.bf16.msra.mxu0 0
        %1667 = vmatpush.bf16.msra.mxu0 0
        %1668 = vmatpush.bf16.msra.mxu0 %v1632
        %1669 = vmatpush.bf16.msra.mxu0 %v1576
        %1670 = vmatpush.bf16.msra.mxu0 %v1568
        %1671 = vmatpush.bf16.msra.mxu0 %v1560
        %1672 = vmatpush.bf16.msra.mxu0 %v1552
        %1673 = vmatmul.bf16.gmra.mxu0 %v1625
        %v1674 = vpop.f32.mrf.mxu0
        %v1675 = vadd.f32 0.0, %v1674
        %v1676 = vpop.f32.mrf.mxu0
        %1677 = vdwg.mxu0
        %1678 = vmatpush.bf16.msra.mxu0 0
        %1679 = vmatpush.bf16.msra.mxu0 0
        %1680 = vmatpush.bf16.msra.mxu0 0
        %1681 = vmatpush.bf16.msra.mxu0 %v1635
        %1682 = vmatpush.bf16.msra.mxu0 %v1577
        %1683 = vmatpush.bf16.msra.mxu0 %v1569
        %1684 = vmatpush.bf16.msra.mxu0 %v1561
        %1685 = vmatpush.bf16.msra.mxu0 %v1553
        %1686 = vmatmul.bf16.gmra.mxu0 %v1625
        %v1687 = vpop.f32.mrf.mxu0
        %v1688 = vadd.f32 0.0, %v1687
        %v1689 = vpop.f32.mrf.mxu0
        %1690 = vdwg.mxu0
        %1691 = vmatpush.bf16.msra.mxu0 0
        %1692 = vmatpush.bf16.msra.mxu0 0
        %1693 = vmatpush.bf16.msra.mxu0 0
        %1694 = vmatpush.bf16.msra.mxu0 %v1638
        %1695 = vmatpush.bf16.msra.mxu0 %v1578
        %1696 = vmatpush.bf16.msra.mxu0 %v1570
        %1697 = vmatpush.bf16.msra.mxu0 %v1562
        %1698 = vmatpush.bf16.msra.mxu0 %v1554
        %1699 = vmatmul.bf16.gmra.mxu0 %v1625
        %v1700 = vpop.f32.mrf.mxu0
        %v1701 = vadd.f32 0.0, %v1700
        %v1702 = vpop.f32.mrf.mxu0
        %1703 = vdwg.mxu0
        %1704 = vmatpush.bf16.msra.mxu0 0
        %1705 = vmatpush.bf16.msra.mxu0 0
        %1706 = vmatpush.bf16.msra.mxu0 0
        %1707 = vmatpush.bf16.msra.mxu0 %v1641
        %1708 = vmatpush.bf16.msra.mxu0 %v1579
        %1709 = vmatpush.bf16.msra.mxu0 %v1571
        %1710 = vmatpush.bf16.msra.mxu0 %v1563
        %1711 = vmatpush.bf16.msra.mxu0 %v1555
        %1712 = vmatmul.bf16.gmra.mxu0 %v1625
        %v1713 = vpop.f32.mrf.mxu0
        %v1714 = vadd.f32 0.0, %v1713
        %v1715 = vpop.f32.mrf.mxu0
        %1716 = vdwg.mxu0
        %1717 = vmatpush.bf16.msra.mxu0 0
        %1718 = vmatpush.bf16.msra.mxu0 0
        %1719 = vmatpush.bf16.msra.mxu0 0
        %1720 = vmatpush.bf16.msra.mxu0 %v1644
        %1721 = vmatpush.bf16.msra.mxu0 %v1580
        %1722 = vmatpush.bf16.msra.mxu0 %v1572
        %1723 = vmatpush.bf16.msra.mxu0 %v1564
        %1724 = vmatpush.bf16.msra.mxu0 %v1556
        %1725 = vmatmul.bf16.gmra.mxu0 %v1625
        %v1726 = vpop.f32.mrf.mxu0
        %v1727 = vadd.f32 0.0, %v1726
        %v1728 = vpop.f32.mrf.mxu0
        %1729 = vdwg.mxu0
        %1730 = vmatpush.bf16.msra.mxu0 0
        %1731 = vmatpush.bf16.msra.mxu0 0
        %1732 = vmatpush.bf16.msra.mxu0 0
        %1733 = vmatpush.bf16.msra.mxu0 %v1647
        %1734 = vmatpush.bf16.msra.mxu0 %v1581
        %1735 = vmatpush.bf16.msra.mxu0 %v1573
        %1736 = vmatpush.bf16.msra.mxu0 %v1565
        %1737 = vmatpush.bf16.msra.mxu0 %v1557
        %1738 = vmatmul.bf16.gmra.mxu0 %v1625
        %v1739 = vpop.f32.mrf.mxu0
        %v1740 = vadd.f32 0.0, %v1739
        %v1741 = vpop.f32.mrf.mxu0
        %1742 = vdwg.mxu0
        %1743 = vmatpush.bf16.msra.mxu0 0
        %1744 = vmatpush.bf16.msra.mxu0 0
        %1745 = vmatpush.bf16.msra.mxu0 0
        %1746 = vmatpush.bf16.msra.mxu0 %v1650
        %1747 = vmatpush.bf16.msra.mxu0 %v1582
        %1748 = vmatpush.bf16.msra.mxu0 %v1574
        %1749 = vmatpush.bf16.msra.mxu0 %v1566
        %1750 = vmatpush.bf16.msra.mxu0 %v1558
        %1751 = vmatmul.bf16.gmra.mxu0 %v1625
        %v1752 = vpop.f32.mrf.mxu0
        %v1753 = vadd.f32 0.0, %v1752
        %v1754 = vpop.f32.mrf.mxu0
        %1755 = vdwg.mxu0
        %v1756 = vadd.f32 %v1398, %v1662
        %v1757 = vadd.f32 %v1399, %v1675
        %v1758 = vadd.f32 %v1400, %v1688
        %v1759 = vadd.f32 %v1401, %v1701
        %v1760 = vadd.f32 %v1402, %v1714
        %v1761 = vadd.f32 %v1403, %v1727
        %v1762 = vadd.f32 %v1404, %v1740
        %v1763 = vadd.f32 %v1405, %v1753
        %1764 = vst [vmem:[#allocation3] sm:$0xff] %v1756
        %1765 = vst [vmem:[#allocation3 + $0x8] sm:$0xff] %v1757
        %1766 = vst [vmem:[#allocation3 + $0x10] sm:$0xff] %v1758
        %1767 = vst [vmem:[#allocation3 + $0x18] sm:$0xff] %v1759
        %1768 = vst [vmem:[#allocation3 + $0x20] sm:$0xff] %v1760
        %1769 = vst [vmem:[#allocation3 + $0x28] sm:$0xff] %v1761
        %1770 = vst [vmem:[#allocation3 + $0x30] sm:$0xff] %v1762
        %1771 = vst [vmem:[#allocation3 + $0x38] sm:$0xff] %v1763
        // Predicated region
        $region53: #{tpu_custom_call.1} parent=31 // pred_check
          %p1772 = pneg %p1015
        $region54: #{tpu_custom_call.1} parent=31 // pred_check_branch
          %1774 = sbr.rel (%p1772) target = $region56
        $region55: #{tpu_custom_call.1} parent=31 // pred_region
          %v1775 = vld [vmem:[#allocation3] sm:$0xff]
          %v1776 = vld [vmem:[#allocation3 + $0x8] sm:$0xff]
          %v1777 = vld [vmem:[#allocation3 + $0x10] sm:$0xff]
          %v1778 = vld [vmem:[#allocation3 + $0x18] sm:$0xff]
          %v1779 = vld [vmem:[#allocation3 + $0x20] sm:$0xff]
          %v1780 = vld [vmem:[#allocation3 + $0x28] sm:$0xff]
          %v1781 = vld [vmem:[#allocation3 + $0x30] sm:$0xff]
          %v1782 = vld [vmem:[#allocation3 + $0x38] sm:$0xff]
          %v1783 = vld [vmem:[%s2] sm:$0xff]
          %1785 = vset.pattern.permute.xlu0 0
          %1786 = vperm.xlu0 %1785, %v1783
          %v1787 = vpop.permute.xlu0 %1786
          %v1789 = vadd.f32 %v1775, %v1787
          %v1790 = vadd.f32 %v1776, %v1787
          %v1791 = vadd.f32 %v1777, %v1787
          %v1792 = vadd.f32 %v1778, %v1787
          %v1793 = vadd.f32 %v1779, %v1787
          %v1794 = vadd.f32 %v1780, %v1787
          %v1795 = vadd.f32 %v1781, %v1787
          %v1796 = vadd.f32 %v1782, %v1787
          %v1797 = vmin.f32 %v1789, 0.0
          %v1798 = vmin.f32 %v1790, 0.0
          %v1799 = vmin.f32 %v1791, 0.0
          %v1800 = vmin.f32 %v1792, 0.0
          %v1801 = vmin.f32 %v1793, 0.0
          %v1802 = vmin.f32 %v1794, 0.0
          %v1803 = vmin.f32 %v1795, 0.0
          %v1804 = vmin.f32 %v1796, 0.0
          %v1805 = vmul.f32 %v1797, 1.442695
          %v1806 = vpow.pop %v1805
          %v1807 = vmul.f32 %v1798, 1.442695
          %v1808 = vpow.pop %v1807
          %v1809 = vmul.f32 %v1799, 1.442695
          %v1810 = vpow.pop %v1809
          %v1811 = vmul.f32 %v1800, 1.442695
          %v1812 = vpow.pop %v1811
          %v1813 = vmul.f32 %v1801, 1.442695
          %v1814 = vpow.pop %v1813
          %v1815 = vmul.f32 %v1802, 1.442695
          %v1816 = vpow.pop %v1815
          %v1817 = vmul.f32 %v1803, 1.442695
          %v1818 = vpow.pop %v1817
          %v1819 = vmul.f32 %v1804, 1.442695
          %v1820 = vpow.pop %v1819
          %v1821 = vsub.f32 %v1806, 1.0
          %v1822 = vsub.f32 %v1808, 1.0
          %v1823 = vsub.f32 %v1810, 1.0
          %v1824 = vsub.f32 %v1812, 1.0
          %v1825 = vsub.f32 %v1814, 1.0
          %v1826 = vsub.f32 %v1816, 1.0
          %v1827 = vsub.f32 %v1818, 1.0
          %v1828 = vsub.f32 %v1820, 1.0
          %v1829 = vmul.f32 %v1821, 1.7580993
          %v1830 = vmul.f32 %v1822, 1.7580993
          %v1831 = vmul.f32 %v1823, 1.7580993
          %v1832 = vmul.f32 %v1824, 1.7580993
          %v1833 = vmul.f32 %v1825, 1.7580993
          %v1834 = vmul.f32 %v1826, 1.7580993
          %v1835 = vmul.f32 %v1827, 1.7580993
          %v1836 = vmul.f32 %v1828, 1.7580993
          %vm1837 = vcmp.gt.f32.partialorder %v1789, 0.0
          %vm1838 = vcmp.gt.f32.partialorder %v1790, 0.0
          %vm1839 = vcmp.gt.f32.partialorder %v1791, 0.0
          %vm1840 = vcmp.gt.f32.partialorder %v1792, 0.0
          %vm1841 = vcmp.gt.f32.partialorder %v1793, 0.0
          %vm1842 = vcmp.gt.f32.partialorder %v1794, 0.0
          %vm1843 = vcmp.gt.f32.partialorder %v1795, 0.0
          %vm1844 = vcmp.gt.f32.partialorder %v1796, 0.0
          %v1845 = vmul.f32 %v1789, 1.050701
          %v1846 = vmul.f32 %v1790, 1.050701
          %v1847 = vmul.f32 %v1791, 1.050701
          %v1848 = vmul.f32 %v1792, 1.050701
          %v1849 = vmul.f32 %v1793, 1.050701
          %v1850 = vmul.f32 %v1794, 1.050701
          %v1851 = vmul.f32 %v1795, 1.050701
          %v1852 = vmul.f32 %v1796, 1.050701
          %v1853 = vsel %vm1837, %v1845, %v1829
          %v1854 = vsel %vm1838, %v1846, %v1830
          %v1855 = vsel %vm1839, %v1847, %v1831
          %v1856 = vsel %vm1840, %v1848, %v1832
          %v1857 = vsel %vm1841, %v1849, %v1833
          %v1858 = vsel %vm1842, %v1850, %v1834
          %v1859 = vsel %vm1843, %v1851, %v1835
          %v1860 = vsel %vm1844, %v1852, %v1836
          %1861 = vst [vmem:[%s239] sm:$0xff] %v1853
          %1862 = vst [vmem:[%s239 + $0x8] sm:$0xff] %v1854
          %1863 = vst [vmem:[%s239 + $0x10] sm:$0xff] %v1855
          %1864 = vst [vmem:[%s239 + $0x18] sm:$0xff] %v1856
          %1865 = vst [vmem:[%s239 + $0x20] sm:$0xff] %v1857
          %1866 = vst [vmem:[%s239 + $0x28] sm:$0xff] %v1858
          %1867 = vst [vmem:[%s239 + $0x30] sm:$0xff] %v1859
          %1868 = vst [vmem:[%s239 + $0x38] sm:$0xff] %v1860
        $region56: #{tpu_custom_call.1} parent=31 // pred_fallthru
          _
        %s1869 = sand.u32 %s116, 1
        %s1870 = scalar_lea.sflag [#allocation6], %s1869
        %s1871 = sand.u32 %s116, 1
        %s1872 = smul.addr %s1871, 64
        %s1873 = scalar_lea.vmem [#allocation9], %s1872
        // Predicated region
        $region57: #{tpu_custom_call.1} parent=31 // pred_check
          %p1874 = pneg %p126
        $region58: #{tpu_custom_call.1} parent=31 // pred_check_branch
          %1876 = sbr.rel (%p1874) target = $region60
        $region59: #{tpu_custom_call.1} parent=31 // pred_region
          %1878 = vsyncadd %s1870, 0
          %s1879 = smul.addr %s27, 8
          %s1880 = smul.addr %s1879, 8
          %s1881 = scalar_lea.hbm %s3, %s1880
          %s1883 = sshll.u32 %s1873, 4
          %s1884 = int_to_ptr.vmem [resolvable:$true] %s1883
          %s1885 = sshll.u32 %s1881, 4
          %s1886 = int_to_ptr.hbm [resolvable:$true] %s1885
          %1888 = dma.vmem_to_hbm [thread:$0]  %s1884, 1024, %s1886, %s1870
        $region60: #{tpu_custom_call.1} parent=31 // pred_fallthru
          _
      $region32: #{tpu_custom_call.1} parent=5 // pred_fallthru
        _
      %p1889 = scmp.le.s32.totalorder 2, %s18
      // Predicated region
      $region61: #{tpu_custom_call.1} parent=5 // pred_check
        %p1890 = pneg %p1889
      $region62: #{tpu_custom_call.1} parent=5 // pred_check_branch
        %1892 = sbr.rel (%p1890) target = $region64
      $region63: #{tpu_custom_call.1} parent=5 // pred_region
        %s1893 = ssub.s32 %s18, 2
        // Predicated region
        $region65: #{tpu_custom_call.1} parent=63 // pred_check
          %p1894 = pneg %p132
        $region66: #{tpu_custom_call.1} parent=63 // pred_check_branch
          %1896 = sbr.rel (%p1894) target = $region68
        $region67: #{tpu_custom_call.1} parent=63 // pred_region
          %s1897 = sand.u32 %s117, 1
          %s1898 = scalar_lea.sflag [#allocation6], %s1897
          %s1899 = sand.u32 %s117, 1
          %s1900 = smul.addr %s1899, 64
          %s1901 = scalar_lea.vmem [#allocation9], %s1900
          %1903 = dma.done %s1898, 1024
        $region68: #{tpu_custom_call.1} parent=63 // pred_fallthru
          _
      $region64: #{tpu_custom_call.1} parent=5 // pred_fallthru
        _
    $region6: #{tpu_custom_call.1} parent=1 // loop_footer
      %s22 = sadd.s32 1, %s18
    $region7: #{tpu_custom_call.1} parent=1 // loop_footer_branch
      %17 = sbr.rel target = $region3
    $region8: #{tpu_custom_call.1} parent=1 // loop_exit
      _
    %1904 = vsyncpa [#allocation5], 1
    %s1905 = scalar_lea.sflag [#allocation5], 1
    %1906 = vsyncpa %s1905, 1
    %1907 = vsyncpa [#allocation8], 1
    %s1908 = scalar_lea.sflag [#allocation8], 1
    %1909 = vsyncpa %s1908, 1
    %1910 = vsyncpa [#allocation6], 1
    %s1911 = scalar_lea.sflag [#allocation6], 1
    %1912 = vsyncpa %s1911, 1

</llo_original>
